<compile_context>
chip_gen: v6e
topology: v6e:2x2x1
jax: 0.10.0
libtpu: 0.0.40
codegen_flags: <defaults>
</compile_context>

<pallas_src>
import jax
import jax.numpy as jnp
import numpy as np
from jax.experimental import pallas as pl
from jax.experimental.pallas import tpu as pltpu


# ----------------------------------------------------------------------------
# VMEM sizing helpers (per-generation: 64 MiB per TC on v7x, 128 MiB v5e/v6e)
# ----------------------------------------------------------------------------
def _vmem_capacity_bytes(default=64 * 1024 * 1024):
    """Physical VMEM per core; conservative (v7x) fallback if the query fails."""
    try:
        info = pltpu.get_tpu_info()
        cap = getattr(info, "vmem_capacity_bytes", None)
        if cap:
            return int(cap)
    except Exception:
        pass
    return default


def _pick_block_b(B, S, H, x_itemsize, w_itemsize, vmem_limit_bytes, n_towers=4):
    """Largest batch tile whose *real* per-step live footprint fits the budget.

    Per tower per step: double-buffered x block (2 * TB*S*H * itemsize), the
    f32 GELU intermediate h (+ temporaries, modeled as 8 B/elem), and the
    double-buffered mask / output blocks.  Plus the VMEM-resident
    (double-buffered) shared weight W.  TB is restricted to multiples of 8
    (sublane alignment of the (TB, S)/(TB, H) blocks) or the full batch."""
    budget = int(0.70 * vmem_limit_bytes)
    fixed = 2 * H * H * w_itemsize + 2 * H * 4            # resident W (2 bufs) + bias
    per_row = n_towers * (
        S * H * (2 * x_itemsize + 8)                      # x (2x) + f32 h (+ headroom)
        + 2 * S * 4                                       # mask block (f32, 2x)
        + 2 * H * 4                                       # out block (f32, 2x)
    )
    cap = max(1, (budget - fixed) // per_row)
    if B <= cap:
        return B
    best = None
    for cand in range(8, int(min(B, cap)) + 1, 8):        # multiples of 8 only
        if B % cand == 0:
            best = cand
    # Fall back to the full batch (always a legal block) if no aligned divisor fits.
    return best if best is not None else B


# ----------------------------------------------------------------------------
# Kernel 1: fused 4-tower token encode (dense+GELU) -> masked sum pool -> L2
# ----------------------------------------------------------------------------
def encode_pool_kernel(hr_x_ref, head_x_ref, tr_x_ref, tail_x_ref,
                       hr_m_ref, head_m_ref, tr_m_ref, tail_m_ref,
                       w_ref, b_ref,
                       hr_o_ref, head_o_ref, tr_o_ref, tail_o_ref):
    # x refs:  (TB*S, H) token embeddings (bf16 or f32 -- matmul dtype)
    # m refs:  (TB, S)   attention masks (f32)
    # w_ref:   (H, H)    shared encoder weight (constant block index -> resident)
    # b_ref:   (1, H)    bias (f32)
    # o refs:  (TB, H)   pooled + L2-normalized vectors (f32)
    w = w_ref[...]
    bias = b_ref[...]
    towers = ((hr_x_ref, hr_m_ref, hr_o_ref),
              (head_x_ref, head_m_ref, head_o_ref),
              (tr_x_ref, tr_m_ref, tr_o_ref),
              (tail_x_ref, tail_m_ref, tail_o_ref))
    for x_ref, m_ref, o_ref in towers:
        mask = m_ref[...]                                  # (TB, S) f32
        TB, S = mask.shape

        # Encoder: dense + GELU on the MXU with f32 accumulation; epilogue f32.
        h = jnp.dot(x_ref[...], w, preferred_element_type=jnp.float32) + bias
        h = jax.nn.gelu(h)                                 # (TB*S, H) f32
        H = h.shape[1]

        # Masked sum pool over S on the VPU (multiply) + XLU (sublane reduce).
        # The masked-mean denominator is dropped: L2-normalize cancels any
        # positive per-row scale (all-padding rows still yield the 0 vector).
        h3 = h.reshape(TB, S, H)
        sum_emb = jnp.sum(h3 * mask[:, :, None], axis=1)   # (TB, H)

        # nn.functional.normalize(dim=1): v / max(||v||, 1e-12)  ==  v * rsqrt(max(ss,1e-24))
        ss = jnp.sum(sum_emb * sum_emb, axis=1, keepdims=True)
        o_ref[...] = (sum_emb * jax.lax.rsqrt(jnp.maximum(ss, 1e-24))).astype(o_ref.dtype)


def encode_pool_towers(xs, masks, W, b, *, block_b=None, compute_dtype=jnp.bfloat16):
    """xs: 4-tuple of (B, S, H) token embeddings; masks: 4-tuple of (B, S).
    Returns a 4-tuple of (B, H) f32 pooled + normalized vectors.
    compute_dtype: dtype fed to the MXU (default bf16; pass jnp.float32 for an
    exact-f32 path).  x and W are cast once wrapper-side so dtypes match and
    jnp.dot never silently promotes to an emulated f32 matmul."""
    B, S, H = xs[0].shape
    dtype = jnp.dtype(compute_dtype) if compute_dtype is not None else jnp.dtype(xs[0].dtype)

    # Free major-dim reshape (B, S, H) -> (B*S, H); NO stack / extra HBM pass.
    xs2 = tuple(x.astype(dtype).reshape(B * S, H) for x in xs)
    ms = tuple(m.astype(jnp.float32) for m in masks)
    W2 = W.astype(dtype)
    b2 = b.reshape(1, H).astype(jnp.float32)

    vmem_cap = _vmem_capacity_bytes()
    vmem_limit = min(max(32 * 1024 * 1024, int(0.9 * vmem_cap)), 128 * 1024 * 1024)

    itemsize = dtype.itemsize
    TB = block_b if block_b is not None else _pick_block_b(B, S, H, itemsize, itemsize,
                                                           vmem_limit)
    assert B % TB == 0, "batch must be divisible by the batch tile"
    NB = B // TB

    x_spec = pl.BlockSpec((TB * S, H), lambda nb: (nb, 0))
    m_spec = pl.BlockSpec((TB, S), lambda nb: (nb, 0))
    o_spec = pl.BlockSpec((TB, H), lambda nb: (nb, 0))
    out_sds = jax.ShapeDtypeStruct((B, H), jnp.float32)

    return pl.pallas_call(
        encode_pool_kernel,
        out_shape=(out_sds,) * 4,
        grid=(NB,),
        in_specs=[x_spec] * 4 + [m_spec] * 4 + [
            pl.BlockSpec((H, H), lambda nb: (0, 0)),       # weight stays resident
            pl.BlockSpec((1, H), lambda nb: (0, 0)),
        ],
        out_specs=(o_spec,) * 4,
        compiler_params=pltpu.CompilerParams(
            dimension_semantics=("parallel",),
            vmem_limit_bytes=vmem_limit,
        ),
    )(*xs2, *ms, W2, b2)


# ----------------------------------------------------------------------------
# Kernel 2: compute_logits hot path (tiled over (row_block, col_block))
#   logit_head = (hr @ tail.T - margin*I) * exp(log_inv_t)
#   logit_tail = (tr @ head.T - margin*I) * exp(log_inv_t)
# ----------------------------------------------------------------------------
def logits_kernel(hr_ref, tail_t_ref, tr_ref, head_t_ref, scal_ref, lh_ref, lt_ref):
    # hr/tr: (BM, H) row blocks; tail_t/head_t: (H, BN) pre-transposed column
    # blocks (plain (BM,H)@(H,BN) matmuls, no per-tile relayout);
    # scal_ref: (2,) f32 SMEM = [inv_t, margin*inv_t] (hoisted to the wrapper).
    inv_t = scal_ref[0]
    lh_ref[...] = inv_t * jnp.dot(hr_ref[...], tail_t_ref[...],
                                  preferred_element_type=jnp.float32)
    lt_ref[...] = inv_t * jnp.dot(tr_ref[...], head_t_ref[...],
                                  preferred_element_type=jnp.float32)

    # Additive margin only on the global diagonal: with square tiles the global
    # diagonal hits local (r, r) exactly on row_block == col_block tiles.
    @pl.when(pl.program_id(0) == pl.program_id(1))
    def _():
        BM, BN = lh_ref.shape
        row = jax.lax.broadcasted_iota(jnp.int32, (BM, BN), 0)
        col = jax.lax.broadcasted_iota(jnp.int32, (BM, BN), 1)
        diag = jnp.where(row == col, scal_ref[1], jnp.float32(0.0))   # margin*inv_t on diag
        lh_ref[...] = lh_ref[...] - diag
        lt_ref[...] = lt_ref[...] - diag


def compute_logits_pallas(hr, head, tr, tail, log_inv_t, add_margin,
                          training=True, *, block_b=None):
    B, H = hr.shape
    log_inv_t = jnp.asarray(log_inv_t, jnp.float32)        # traced-safe (learned param)
    inv_t = jnp.exp(log_inv_t)                             # hoisted out of the kernel
    margin = add_margin if training else 0.0
    scalars = jnp.stack([inv_t, inv_t * jnp.float32(margin)])

    # One-time cheap wrapper transposes so both tile matmuls contract the lane
    # dim of the LHS against the sublane dim of the RHS (no in-kernel transpose).
    tail_t = tail.T                                        # (H, B)
    head_t = head.T                                        # (H, B)

    if block_b is not None:
        BM = block_b
    elif B <= 512:
        BM = B
    elif B % 256 == 0:
        BM = 256
    elif B % 128 == 0:
        BM = 128
    else:
        BM = B
    assert B % BM == 0, "batch must be divisible by the logits tile size"
    NB = B // BM

    lh, lt = pl.pallas_call(
        logits_kernel,
        out_shape=(jax.ShapeDtypeStruct((B, B), jnp.float32),
                   jax.ShapeDtypeStruct((B, B), jnp.float32)),
        grid=(NB, NB),
        in_specs=[
            pl.BlockSpec((BM, H), lambda i, j: (i, 0)),     # hr     -> row block
            pl.BlockSpec((H, BM), lambda i, j: (0, j)),     # tail^T -> col block
            pl.BlockSpec((BM, H), lambda i, j: (i, 0)),     # tr     -> row block
            pl.BlockSpec((H, BM), lambda i, j: (0, j)),     # head^T -> col block
            pl.BlockSpec(memory_space=pltpu.MemorySpace.SMEM),
        ],
        out_specs=(pl.BlockSpec((BM, BM), lambda i, j: (i, j)),
                   pl.BlockSpec((BM, BM), lambda i, j: (i, j))),
        compiler_params=pltpu.CompilerParams(
            dimension_semantics=("parallel", "parallel"),
        ),
    )(hr, tail_t, tr, head_t, scalars)

    return {
        "logit_head": lh,
        "logit_tail": lt,
        "labels": jnp.arange(B, dtype=jnp.int32),
        "inv_t": inv_t,
        "hr_tr_s": jnp.float32(15.0),
        "hr_vector": hr, "tr_vector": tr,
        "head_vector": head, "tail_vector": tail,
    }


# ----------------------------------------------------------------------------
# BiLinker.forward (pooling='mean'); the four tower encodes share one fused
# pallas_call (weights shared between head_bert/tail_bert as at deepcopy init).
# ----------------------------------------------------------------------------
def bilinker_forward(hr_x, hr_m, head_x, head_m, tr_x, tr_m, tail_x, tail_m, W, b,
                     *, compute_dtype=jnp.bfloat16, block_b=None):
    hr_v, head_v, tr_v, tail_v = encode_pool_towers(
        (hr_x, head_x, tr_x, tail_x), (hr_m, head_m, tr_m, tail_m), W, b,
        compute_dtype=compute_dtype, block_b=block_b)
    return {"hr_vector": hr_v, "head_vector": head_v,
            "tr_vector": tr_v, "tail_vector": tail_v}


# ----------------------------------------------------------------------------
# Pure-JAX references for verification
# ----------------------------------------------------------------------------
def ref_encode_pool(x, mask, W, b):
    h = jax.nn.gelu(jnp.einsum("bsh,hd->bsd", x.astype(jnp.float32),
                               W.astype(jnp.float32)) + b)
    mf = mask.astype(jnp.float32)[..., None]
    pooled = (h * mf).sum(1) / jnp.maximum(mf.sum(1), 1e-4)
    n = jnp.maximum(jnp.linalg.norm(pooled, axis=1, keepdims=True), 1e-12)
    return pooled / n


def ref_logits(hr, head, tr, tail, log_inv_t, margin):
    inv_t = np.exp(log_inv_t)
    B = hr.shape[0]
    lh = (hr @ tail.T - margin * jnp.eye(B)) * inv_t
    lt = (tr @ head.T - margin * jnp.eye(B)) * inv_t
    return lh, lt


if __name__ == "__main__":
    B, S, H = 4, 8, 32
    T_TEMP = 0.05           # args.t  -> log_inv_t = log(1/t)
    ADD_MARGIN = 0.02       # args.additive_margin
    log_inv_t = float(np.log(1.0 / T_TEMP))

    key = jax.random.PRNGKey(0)
    kW, kb, k1, k2, k3, k4 = jax.random.split(key, 6)
    W = 0.05 * jax.random.normal(kW, (H, H), dtype=jnp.float32)
    b = 0.01 * jax.random.normal(kb, (H,), dtype=jnp.float32)

    hr_x = jax.random.normal(k1, (B, S, H), dtype=jnp.float32)
    head_x = jax.random.normal(k2, (B, S, H), dtype=jnp.float32)
    tr_x = jax.random.normal(k3, (B, S, H), dtype=jnp.float32)
    tail_x = jax.random.normal(k4, (B, S, H), dtype=jnp.float32)

    # attention masks: 1s with a couple of trailing pads on some rows
    base_mask = np.ones((B, S), dtype=np.float32)
    base_mask[0, -2:] = 0.0
    base_mask[2, -3:] = 0.0
    hr_m = head_m = tr_m = tail_m = jnp.asarray(base_mask)

    # exact-f32 path (validation) -------------------------------------------
    out = bilinker_forward(hr_x, hr_m, head_x, head_m, tr_x, tr_m,
                           tail_x, tail_m, W, b, compute_dtype=jnp.float32)
    logits = compute_logits_pallas(out["hr_vector"], out["head_vector"],
                                   out["tr_vector"], out["tail_vector"],
                                   log_inv_t, ADD_MARGIN, training=True)
    jax.block_until_ready(logits["logit_head"])
    jax.block_until_ready(logits["logit_tail"])

    ref_hr = ref_encode_pool(hr_x, hr_m, W, b)
    ref_head = ref_encode_pool(head_x, head_m, W, b)
    ref_tr = ref_encode_pool(tr_x, tr_m, W, b)
    ref_tail = ref_encode_pool(tail_x, tail_m, W, b)
    ref_lh, ref_lt = ref_logits(ref_hr, ref_head, ref_tr, ref_tail, log_inv_t, ADD_MARGIN)

    np.testing.assert_allclose(np.asarray(out["hr_vector"]), np.asarray(ref_hr), rtol=1e-5, atol=1e-5)
    np.testing.assert_allclose(np.asarray(out["head_vector"]), np.asarray(ref_head), rtol=1e-5, atol=1e-5)
    np.testing.assert_allclose(np.asarray(out["tr_vector"]), np.asarray(ref_tr), rtol=1e-5, atol=1e-5)
    np.testing.assert_allclose(np.asarray(out["tail_vector"]), np.asarray(ref_tail), rtol=1e-5, atol=1e-5)
    np.testing.assert_allclose(np.asarray(logits["logit_head"]), np.asarray(ref_lh), rtol=1e-4, atol=1e-4)
    np.testing.assert_allclose(np.asarray(logits["logit_tail"]), np.asarray(ref_lt), rtol=1e-4, atol=1e-4)

    # default bf16 MXU path (production; f32 accumulation + f32 epilogue) ----
    out_bf16 = bilinker_forward(hr_x, hr_m, head_x, head_m, tr_x, tr_m,
                                tail_x, tail_m, W, b)           # compute_dtype=bf16
    jax.block_until_ready(out_bf16["hr_vector"])
    np.testing.assert_allclose(np.asarray(out_bf16["hr_vector"]), np.asarray(ref_hr),
                               rtol=0, atol=5e-2)
    np.testing.assert_allclose(np.asarray(out_bf16["tail_vector"]), np.asarray(ref_tail),
                               rtol=0, atol=5e-2)

    print("KERNEL_OK")
</pallas_src>

<mosaic_0001>
module attributes {stable_mosaic.version = 11 : i64} {
  func.func @encode_pool_kernel(%arg0: i32, %arg1: memref<32x32xf32, #tpu.memory_space<vmem>>, %arg2: memref<32x32xf32, #tpu.memory_space<vmem>>, %arg3: memref<32x32xf32, #tpu.memory_space<vmem>>, %arg4: memref<32x32xf32, #tpu.memory_space<vmem>>, %arg5: memref<4x8xf32, #tpu.memory_space<vmem>>, %arg6: memref<4x8xf32, #tpu.memory_space<vmem>>, %arg7: memref<4x8xf32, #tpu.memory_space<vmem>>, %arg8: memref<4x8xf32, #tpu.memory_space<vmem>>, %arg9: memref<32x32xf32, #tpu.memory_space<vmem>>, %arg10: memref<1x32xf32, #tpu.memory_space<vmem>>, %arg11: memref<4x32xf32, #tpu.memory_space<vmem>>, %arg12: memref<4x32xf32, #tpu.memory_space<vmem>>, %arg13: memref<4x32xf32, #tpu.memory_space<vmem>>, %arg14: memref<4x32xf32, #tpu.memory_space<vmem>>) attributes {dimension_semantics = [#tpu.dimension_semantics<parallel>], iteration_bounds = array<i64: 1>, scalar_prefetch = 0 : i64, scratch_operands = 0 : i64, tpu.core_type = #tpu.core_type<tc>, window_params = [{transform_indices = @transform_0, window_bounds = array<i64: 32, 32>}, {transform_indices = @transform_1, window_bounds = array<i64: 32, 32>}, {transform_indices = @transform_2, window_bounds = array<i64: 32, 32>}, {transform_indices = @transform_3, window_bounds = array<i64: 32, 32>}, {transform_indices = @transform_4, window_bounds = array<i64: 4, 8>}, {transform_indices = @transform_5, window_bounds = array<i64: 4, 8>}, {transform_indices = @transform_6, window_bounds = array<i64: 4, 8>}, {transform_indices = @transform_7, window_bounds = array<i64: 4, 8>}, {pipeline_mode = #tpu.pipeline_mode<synchronous>, transform_indices = @transform_8, window_bounds = array<i64: 32, 32>}, {pipeline_mode = #tpu.pipeline_mode<synchronous>, transform_indices = @transform_9, window_bounds = array<i64: 1, 32>}, {transform_indices = @transform_10, window_bounds = array<i64: 4, 32>}, {transform_indices = @transform_11, window_bounds = array<i64: 4, 32>}, {transform_indices = @transform_12, window_bounds = array<i64: 4, 32>}, {transform_indices = @transform_13, window_bounds = array<i64: 4, 32>}]} {
    %c0 = arith.constant 0 : index
    %c0_0 = arith.constant 0 : index
    %0 = vector.load %arg9[%c0, %c0_0] : memref<32x32xf32, #tpu.memory_space<vmem>>, vector<32x32xf32>
    %c0_1 = arith.constant 0 : index
    %c0_2 = arith.constant 0 : index
    %1 = vector.load %arg10[%c0_1, %c0_2] : memref<1x32xf32, #tpu.memory_space<vmem>>, vector<1x32xf32>
    %c0_3 = arith.constant 0 : index
    %c0_4 = arith.constant 0 : index
    %2 = vector.load %arg5[%c0_3, %c0_4] : memref<4x8xf32, #tpu.memory_space<vmem>>, vector<4x8xf32>
    %c0_5 = arith.constant 0 : index
    %c0_6 = arith.constant 0 : index
    %3 = vector.load %arg1[%c0_5, %c0_6] : memref<32x32xf32, #tpu.memory_space<vmem>>, vector<32x32xf32>
    %cst = arith.constant dense<0.000000e+00> : vector<32x32xf32>
    %4 = tpu.matmul %3, %0, %cst {dimension_numbers = #tpu.dot_dimension_numbers<[1], [0], [0], [1], [0, 0, 1, 1], [], []>} : vector<32x32xf32>, vector<32x32xf32>, vector<32x32xf32> -> vector<32x32xf32>
    %5 = vector.broadcast %1 : vector<1x32xf32> to vector<32x32xf32>
    %6 = arith.addf %4, %5 : vector<32x32xf32>
    %7 = arith.mulf %6, %6 : vector<32x32xf32>
    %8 = arith.mulf %6, %7 : vector<32x32xf32>
    %cst_7 = arith.constant 4.471500e-02 : f32
    %9 = vector.broadcast %cst_7 : f32 to vector<32x32xf32>
    %10 = arith.mulf %9, %8 : vector<32x32xf32>
    %11 = arith.addf %6, %10 : vector<32x32xf32>
    %cst_8 = arith.constant 0.797884583 : f32
    %12 = vector.broadcast %cst_8 : f32 to vector<32x32xf32>
    %13 = arith.mulf %12, %11 : vector<32x32xf32>
    %14 = math.tanh %13 : vector<32x32xf32>
    %cst_9 = arith.constant 1.000000e+00 : f32
    %15 = vector.broadcast %cst_9 : f32 to vector<32x32xf32>
    %16 = arith.addf %15, %14 : vector<32x32xf32>
    %cst_10 = arith.constant 5.000000e-01 : f32
    %17 = vector.broadcast %cst_10 : f32 to vector<32x32xf32>
    %18 = arith.mulf %17, %16 : vector<32x32xf32>
    %19 = arith.mulf %6, %18 : vector<32x32xf32>
    %20 = vector.shape_cast %19 : vector<32x32xf32> to vector<4x8x32xf32>
    %21 = vector.shape_cast %2 : vector<4x8xf32> to vector<4x8x1xf32>
    %22 = vector.broadcast %21 : vector<4x8x1xf32> to vector<4x8x32xf32>
    %23 = arith.mulf %20, %22 : vector<4x8x32xf32>
    %cst_11 = arith.constant dense<0.000000e+00> : vector<4x32xf32>
    %24 = vector.multi_reduction <add>, %23, %cst_11 [1] : vector<4x8x32xf32> to vector<4x32xf32>
    %25 = arith.mulf %24, %24 : vector<4x32xf32>
    %cst_12 = arith.constant dense<0.000000e+00> : vector<4xf32>
    %26 = vector.multi_reduction <add>, %25, %cst_12 [1] : vector<4x32xf32> to vector<4xf32>
    %27 = vector.shape_cast %26 : vector<4xf32> to vector<4x1xf32>
    %cst_13 = arith.constant 1.000000e-24 : f32
    %28 = vector.broadcast %cst_13 : f32 to vector<4x1xf32>
    %29 = arith.maximumf %27, %28 : vector<4x1xf32>
    %30 = math.rsqrt %29 : vector<4x1xf32>
    %31 = vector.broadcast %30 : vector<4x1xf32> to vector<4x32xf32>
    %32 = arith.mulf %24, %31 : vector<4x32xf32>
    %c0_14 = arith.constant 0 : index
    %c0_15 = arith.constant 0 : index
    %33 = vector.load %arg11[%c0_14, %c0_15] : memref<4x32xf32, #tpu.memory_space<vmem>>, vector<4x32xf32>
    tpu.vector_store %arg11[%c0_14, %c0_15], %32 {strides = array<i32>} : memref<4x32xf32, #tpu.memory_space<vmem>>, vector<4x32xf32>,
    %c0_16 = arith.constant 0 : index
    %c0_17 = arith.constant 0 : index
    %34 = vector.load %arg6[%c0_16, %c0_17] : memref<4x8xf32, #tpu.memory_space<vmem>>, vector<4x8xf32>
    %c0_18 = arith.constant 0 : index
    %c0_19 = arith.constant 0 : index
    %35 = vector.load %arg2[%c0_18, %c0_19] : memref<32x32xf32, #tpu.memory_space<vmem>>, vector<32x32xf32>
    %cst_20 = arith.constant dense<0.000000e+00> : vector<32x32xf32>
    %36 = tpu.matmul %35, %0, %cst_20 {dimension_numbers = #tpu.dot_dimension_numbers<[1], [0], [0], [1], [0, 0, 1, 1], [], []>} : vector<32x32xf32>, vector<32x32xf32>, vector<32x32xf32> -> vector<32x32xf32>
    %37 = vector.broadcast %1 : vector<1x32xf32> to vector<32x32xf32>
    %38 = arith.addf %36, %37 : vector<32x32xf32>
    %39 = arith.mulf %38, %38 : vector<32x32xf32>
    %40 = arith.mulf %38, %39 : vector<32x32xf32>
    %cst_21 = arith.constant 4.471500e-02 : f32
    %41 = vector.broadcast %cst_21 : f32 to vector<32x32xf32>
    %42 = arith.mulf %41, %40 : vector<32x32xf32>
    %43 = arith.addf %38, %42 : vector<32x32xf32>
    %cst_22 = arith.constant 0.797884583 : f32
    %44 = vector.broadcast %cst_22 : f32 to vector<32x32xf32>
    %45 = arith.mulf %44, %43 : vector<32x32xf32>
    %46 = math.tanh %45 : vector<32x32xf32>
    %cst_23 = arith.constant 1.000000e+00 : f32
    %47 = vector.broadcast %cst_23 : f32 to vector<32x32xf32>
    %48 = arith.addf %47, %46 : vector<32x32xf32>
    %cst_24 = arith.constant 5.000000e-01 : f32
    %49 = vector.broadcast %cst_24 : f32 to vector<32x32xf32>
    %50 = arith.mulf %49, %48 : vector<32x32xf32>
    %51 = arith.mulf %38, %50 : vector<32x32xf32>
    %52 = vector.shape_cast %51 : vector<32x32xf32> to vector<4x8x32xf32>
    %53 = vector.shape_cast %34 : vector<4x8xf32> to vector<4x8x1xf32>
    %54 = vector.broadcast %53 : vector<4x8x1xf32> to vector<4x8x32xf32>
    %55 = arith.mulf %52, %54 : vector<4x8x32xf32>
    %cst_25 = arith.constant dense<0.000000e+00> : vector<4x32xf32>
    %56 = vector.multi_reduction <add>, %55, %cst_25 [1] : vector<4x8x32xf32> to vector<4x32xf32>
    %57 = arith.mulf %56, %56 : vector<4x32xf32>
    %cst_26 = arith.constant dense<0.000000e+00> : vector<4xf32>
    %58 = vector.multi_reduction <add>, %57, %cst_26 [1] : vector<4x32xf32> to vector<4xf32>
    %59 = vector.shape_cast %58 : vector<4xf32> to vector<4x1xf32>
    %cst_27 = arith.constant 1.000000e-24 : f32
    %60 = vector.broadcast %cst_27 : f32 to vector<4x1xf32>
    %61 = arith.maximumf %59, %60 : vector<4x1xf32>
    %62 = math.rsqrt %61 : vector<4x1xf32>
    %63 = vector.broadcast %62 : vector<4x1xf32> to vector<4x32xf32>
    %64 = arith.mulf %56, %63 : vector<4x32xf32>
    %c0_28 = arith.constant 0 : index
    %c0_29 = arith.constant 0 : index
    %65 = vector.load %arg12[%c0_28, %c0_29] : memref<4x32xf32, #tpu.memory_space<vmem>>, vector<4x32xf32>
    tpu.vector_store %arg12[%c0_28, %c0_29], %64 {strides = array<i32>} : memref<4x32xf32, #tpu.memory_space<vmem>>, vector<4x32xf32>,
    %c0_30 = arith.constant 0 : index
    %c0_31 = arith.constant 0 : index
    %66 = vector.load %arg7[%c0_30, %c0_31] : memref<4x8xf32, #tpu.memory_space<vmem>>, vector<4x8xf32>
    %c0_32 = arith.constant 0 : index
    %c0_33 = arith.constant 0 : index
    %67 = vector.load %arg3[%c0_32, %c0_33] : memref<32x32xf32, #tpu.memory_space<vmem>>, vector<32x32xf32>
    %cst_34 = arith.constant dense<0.000000e+00> : vector<32x32xf32>
    %68 = tpu.matmul %67, %0, %cst_34 {dimension_numbers = #tpu.dot_dimension_numbers<[1], [0], [0], [1], [0, 0, 1, 1], [], []>} : vector<32x32xf32>, vector<32x32xf32>, vector<32x32xf32> -> vector<32x32xf32>
    %69 = vector.broadcast %1 : vector<1x32xf32> to vector<32x32xf32>
    %70 = arith.addf %68, %69 : vector<32x32xf32>
    %71 = arith.mulf %70, %70 : vector<32x32xf32>
    %72 = arith.mulf %70, %71 : vector<32x32xf32>
    %cst_35 = arith.constant 4.471500e-02 : f32
    %73 = vector.broadcast %cst_35 : f32 to vector<32x32xf32>
    %74 = arith.mulf %73, %72 : vector<32x32xf32>
    %75 = arith.addf %70, %74 : vector<32x32xf32>
    %cst_36 = arith.constant 0.797884583 : f32
    %76 = vector.broadcast %cst_36 : f32 to vector<32x32xf32>
    %77 = arith.mulf %76, %75 : vector<32x32xf32>
    %78 = math.tanh %77 : vector<32x32xf32>
    %cst_37 = arith.constant 1.000000e+00 : f32
    %79 = vector.broadcast %cst_37 : f32 to vector<32x32xf32>
    %80 = arith.addf %79, %78 : vector<32x32xf32>
    %cst_38 = arith.constant 5.000000e-01 : f32
    %81 = vector.broadcast %cst_38 : f32 to vector<32x32xf32>
    %82 = arith.mulf %81, %80 : vector<32x32xf32>
    %83 = arith.mulf %70, %82 : vector<32x32xf32>
    %84 = vector.shape_cast %83 : vector<32x32xf32> to vector<4x8x32xf32>
    %85 = vector.shape_cast %66 : vector<4x8xf32> to vector<4x8x1xf32>
    %86 = vector.broadcast %85 : vector<4x8x1xf32> to vector<4x8x32xf32>
    %87 = arith.mulf %84, %86 : vector<4x8x32xf32>
    %cst_39 = arith.constant dense<0.000000e+00> : vector<4x32xf32>
    %88 = vector.multi_reduction <add>, %87, %cst_39 [1] : vector<4x8x32xf32> to vector<4x32xf32>
    %89 = arith.mulf %88, %88 : vector<4x32xf32>
    %cst_40 = arith.constant dense<0.000000e+00> : vector<4xf32>
    %90 = vector.multi_reduction <add>, %89, %cst_40 [1] : vector<4x32xf32> to vector<4xf32>
    %91 = vector.shape_cast %90 : vector<4xf32> to vector<4x1xf32>
    %cst_41 = arith.constant 1.000000e-24 : f32
    %92 = vector.broadcast %cst_41 : f32 to vector<4x1xf32>
    %93 = arith.maximumf %91, %92 : vector<4x1xf32>
    %94 = math.rsqrt %93 : vector<4x1xf32>
    %95 = vector.broadcast %94 : vector<4x1xf32> to vector<4x32xf32>
    %96 = arith.mulf %88, %95 : vector<4x32xf32>
    %c0_42 = arith.constant 0 : index
    %c0_43 = arith.constant 0 : index
    %97 = vector.load %arg13[%c0_42, %c0_43] : memref<4x32xf32, #tpu.memory_space<vmem>>, vector<4x32xf32>
    tpu.vector_store %arg13[%c0_42, %c0_43], %96 {strides = array<i32>} : memref<4x32xf32, #tpu.memory_space<vmem>>, vector<4x32xf32>,
    %c0_44 = arith.constant 0 : index
    %c0_45 = arith.constant 0 : index
    %98 = vector.load %arg8[%c0_44, %c0_45] : memref<4x8xf32, #tpu.memory_space<vmem>>, vector<4x8xf32>
    %c0_46 = arith.constant 0 : index
    %c0_47 = arith.constant 0 : index
    %99 = vector.load %arg4[%c0_46, %c0_47] : memref<32x32xf32, #tpu.memory_space<vmem>>, vector<32x32xf32>
    %cst_48 = arith.constant dense<0.000000e+00> : vector<32x32xf32>
    %100 = tpu.matmul %99, %0, %cst_48 {dimension_numbers = #tpu.dot_dimension_numbers<[1], [0], [0], [1], [0, 0, 1, 1], [], []>} : vector<32x32xf32>, vector<32x32xf32>, vector<32x32xf32> -> vector<32x32xf32>
    %101 = vector.broadcast %1 : vector<1x32xf32> to vector<32x32xf32>
    %102 = arith.addf %100, %101 : vector<32x32xf32>
    %103 = arith.mulf %102, %102 : vector<32x32xf32>
    %104 = arith.mulf %102, %103 : vector<32x32xf32>
    %cst_49 = arith.constant 4.471500e-02 : f32
    %105 = vector.broadcast %cst_49 : f32 to vector<32x32xf32>
    %106 = arith.mulf %105, %104 : vector<32x32xf32>
    %107 = arith.addf %102, %106 : vector<32x32xf32>
    %cst_50 = arith.constant 0.797884583 : f32
    %108 = vector.broadcast %cst_50 : f32 to vector<32x32xf32>
    %109 = arith.mulf %108, %107 : vector<32x32xf32>
    %110 = math.tanh %109 : vector<32x32xf32>
    %cst_51 = arith.constant 1.000000e+00 : f32
    %111 = vector.broadcast %cst_51 : f32 to vector<32x32xf32>
    %112 = arith.addf %111, %110 : vector<32x32xf32>
    %cst_52 = arith.constant 5.000000e-01 : f32
    %113 = vector.broadcast %cst_52 : f32 to vector<32x32xf32>
    %114 = arith.mulf %113, %112 : vector<32x32xf32>
    %115 = arith.mulf %102, %114 : vector<32x32xf32>
    %116 = vector.shape_cast %115 : vector<32x32xf32> to vector<4x8x32xf32>
    %117 = vector.shape_cast %98 : vector<4x8xf32> to vector<4x8x1xf32>
    %118 = vector.broadcast %117 : vector<4x8x1xf32> to vector<4x8x32xf32>
    %119 = arith.mulf %116, %118 : vector<4x8x32xf32>
    %cst_53 = arith.constant dense<0.000000e+00> : vector<4x32xf32>
    %120 = vector.multi_reduction <add>, %119, %cst_53 [1] : vector<4x8x32xf32> to vector<4x32xf32>
    %121 = arith.mulf %120, %120 : vector<4x32xf32>
    %cst_54 = arith.constant dense<0.000000e+00> : vector<4xf32>
    %122 = vector.multi_reduction <add>, %121, %cst_54 [1] : vector<4x32xf32> to vector<4xf32>
    %123 = vector.shape_cast %122 : vector<4xf32> to vector<4x1xf32>
    %cst_55 = arith.constant 1.000000e-24 : f32
    %124 = vector.broadcast %cst_55 : f32 to vector<4x1xf32>
    %125 = arith.maximumf %123, %124 : vector<4x1xf32>
    %126 = math.rsqrt %125 : vector<4x1xf32>
    %127 = vector.broadcast %126 : vector<4x1xf32> to vector<4x32xf32>
    %128 = arith.mulf %120, %127 : vector<4x32xf32>
    %c0_56 = arith.constant 0 : index
    %c0_57 = arith.constant 0 : index
    %129 = vector.load %arg14[%c0_56, %c0_57] : memref<4x32xf32, #tpu.memory_space<vmem>>, vector<4x32xf32>
    tpu.vector_store %arg14[%c0_56, %c0_57], %128 {strides = array<i32>} : memref<4x32xf32, #tpu.memory_space<vmem>>, vector<4x32xf32>,
    return
  }
  func.func @transform_0(%arg0: i32) -> (i32, i32) {
    %c0_i32 = arith.constant 0 : i32
    %c0_i32_0 = arith.constant 0 : i32
    return %arg0, %c0_i32 : i32, i32
  }
  func.func @transform_1(%arg0: i32) -> (i32, i32) {
    %c0_i32 = arith.constant 0 : i32
    %c0_i32_0 = arith.constant 0 : i32
    return %arg0, %c0_i32 : i32, i32
  }
  func.func @transform_2(%arg0: i32) -> (i32, i32) {
    %c0_i32 = arith.constant 0 : i32
    %c0_i32_0 = arith.constant 0 : i32
    return %arg0, %c0_i32 : i32, i32
  }
  func.func @transform_3(%arg0: i32) -> (i32, i32) {
    %c0_i32 = arith.constant 0 : i32
    %c0_i32_0 = arith.constant 0 : i32
    return %arg0, %c0_i32 : i32, i32
  }
  func.func @transform_4(%arg0: i32) -> (i32, i32) {
    %c0_i32 = arith.constant 0 : i32
    %c0_i32_0 = arith.constant 0 : i32
    return %arg0, %c0_i32 : i32, i32
  }
  func.func @transform_5(%arg0: i32) -> (i32, i32) {
    %c0_i32 = arith.constant 0 : i32
    %c0_i32_0 = arith.constant 0 : i32
    return %arg0, %c0_i32 : i32, i32
  }
  func.func @transform_6(%arg0: i32) -> (i32, i32) {
    %c0_i32 = arith.constant 0 : i32
    %c0_i32_0 = arith.constant 0 : i32
    return %arg0, %c0_i32 : i32, i32
  }
  func.func @transform_7(%arg0: i32) -> (i32, i32) {
    %c0_i32 = arith.constant 0 : i32
    %c0_i32_0 = arith.constant 0 : i32
    return %arg0, %c0_i32 : i32, i32
  }
  func.func @transform_8(%arg0: i32) -> (i32, i32) {
    %c0_i32 = arith.constant 0 : i32
    %c0_i32_0 = arith.constant 0 : i32
    %c0_i32_1 = arith.constant 0 : i32
    return %c0_i32, %c0_i32_0 : i32, i32
  }
  func.func @transform_9(%arg0: i32) -> (i32, i32) {
    %c0_i32 = arith.constant 0 : i32
    %c0_i32_0 = arith.constant 0 : i32
    %c0_i32_1 = arith.constant 0 : i32
    return %c0_i32, %c0_i32_0 : i32, i32
  }
  func.func @transform_10(%arg0: i32) -> (i32, i32) {
    %c0_i32 = arith.constant 0 : i32
    %c0_i32_0 = arith.constant 0 : i32
    return %arg0, %c0_i32 : i32, i32
  }
  func.func @transform_11(%arg0: i32) -> (i32, i32) {
    %c0_i32 = arith.constant 0 : i32
    %c0_i32_0 = arith.constant 0 : i32
    return %arg0, %c0_i32 : i32, i32
  }
  func.func @transform_12(%arg0: i32) -> (i32, i32) {
    %c0_i32 = arith.constant 0 : i32
    %c0_i32_0 = arith.constant 0 : i32
    return %arg0, %c0_i32 : i32, i32
  }
  func.func @transform_13(%arg0: i32) -> (i32, i32) {
    %c0_i32 = arith.constant 0 : i32
    %c0_i32_0 = arith.constant 0 : i32
    return %arg0, %c0_i32 : i32, i32
  }
}

</mosaic_0001>

<llo_original>
// kernel: tpu_custom_call.1
$region0: #{tpu_custom_call.1}
  #allocation0 [shape = 'u32[]', space=smem, size = 0x4, offset = 0x4, fixed_abs, tag = 'smem constant byte address 0x4 - core index']
  #allocation1 [shape = 'u32[144,128]{1,0:T(1,128)}', space=vmem, size = 0x12000, scoped, tag = 'internal scratch']
  %s0 = inlined_call_operand.hbm [shape: f32[32,32], index: 0, kind: input, shape index: {}]
  %s1 = inlined_call_operand.hbm [shape: f32[32,32], index: 1, kind: input, shape index: {}]
  %s2 = inlined_call_operand.hbm [shape: f32[32,32], index: 2, kind: input, shape index: {}]
  %s3 = inlined_call_operand.hbm [shape: f32[32,32], index: 3, kind: input, shape index: {}]
  %s4 = inlined_call_operand.vmem [shape: f32[4,8], index: 4, kind: input, shape index: {}]
  %s5 = inlined_call_operand.vmem [shape: f32[4,8], index: 5, kind: input, shape index: {}]
  %s6 = inlined_call_operand.hbm [shape: f32[4,8], index: 6, kind: input, shape index: {}]
  %s7 = inlined_call_operand.vmem [shape: f32[4,8], index: 7, kind: input, shape index: {}]
  %s8 = inlined_call_operand.hbm [shape: f32[32,32], index: 8, kind: input, shape index: {}]
  %s9 = inlined_call_operand.vmem [shape: f32[1,32], index: 9, kind: input, shape index: {}]
  %s10 = inlined_call_operand.hbm [shape: f32[4,32], index: 10, kind: output, shape index: {0}]
  %s11 = inlined_call_operand.hbm [shape: f32[4,32], index: 11, kind: output, shape index: {1}]
  %s12 = inlined_call_operand.hbm [shape: f32[4,32], index: 12, kind: output, shape index: {2}]
  %s13 = inlined_call_operand.hbm [shape: f32[4,32], index: 13, kind: output, shape index: {3}]
  %14 = xla_tuple %s10, %s11, %s12, %s13
  %s15 = sld [smem:[#allocation0]]
  $region98: #{tpu_custom_call.1} parent=0
    _
  %s17 = ssub.s32 1, %s15
  %s18 = scalar_select 0, %s17, %s15
  $region1: #{tpu_custom_call.1} parent=0
    #allocation2 [shape = 'u8[16384]{0}', space=vmem, size = 0x4000, scoped, tag = 'input window, operand 0, single buffered']
    #allocation3 [shape = 's32[1]{0}', space=sflag, size = 0x4, scoped, tag = 'scoped memory for tpu_custom_call.1']
    #allocation4 [shape = 's32[1]{0}', space=sflag, size = 0x4, scoped, tag = 'scoped memory for tpu_custom_call.1']
    #allocation5 [shape = 'u8[16384]{0}', space=vmem, size = 0x4000, scoped, tag = 'input window, operand 1, single buffered']
    #allocation6 [shape = 's32[1]{0}', space=sflag, size = 0x4, scoped, tag = 'scoped memory for tpu_custom_call.1']
    #allocation7 [shape = 'u8[16384]{0}', space=vmem, size = 0x4000, scoped, tag = 'input window, operand 2, single buffered']
    #allocation8 [shape = 'u8[16384]{0}', space=vmem, size = 0x4000, scoped, tag = 'input window, operand 3, single buffered']
    #allocation9 [shape = 's32[1]{0}', space=sflag, size = 0x4, scoped, tag = 'scoped memory for tpu_custom_call.1']
    #allocation10 [shape = 'u8[2048]{0}', space=vmem, size = 0x800, scoped, tag = 'input window, operand 6, single buffered']
    #allocation11 [shape = 'u8[16384]{0}', space=vmem, size = 0x4000, scoped, tag = 'input window, operand 8, single buffered']
    #allocation12 [shape = 's32[1]{0}', space=sflag, size = 0x4, scoped, tag = 'scoped memory for tpu_custom_call.1']
    #allocation13 [shape = 'u8[2048]{0}', space=vmem, size = 0x800, scoped, tag = 'output window, operand 0, single buffered']
    #allocation14 [shape = 'u8[2048]{0}', space=vmem, size = 0x800, scoped, tag = 'output window, operand 1, single buffered']
    #allocation15 [shape = 's32[1]{0}', space=sflag, size = 0x4, scoped, tag = 'scoped memory for tpu_custom_call.1']
    #allocation16 [shape = 'u8[2048]{0}', space=vmem, size = 0x800, scoped, tag = 'output window, operand 2, single buffered']
    #allocation17 [shape = 'u8[2048]{0}', space=vmem, size = 0x800, scoped, tag = 'output window, operand 3, single buffered']
    #allocation18 [shape = 's32[1]{0}', space=sflag, size = 0x4, scoped, tag = 'scoped memory for tpu_custom_call.1']
    %19 = vsyncpa [#allocation3], 0
    %20 = vsyncpa [#allocation6], 0
    %21 = vsyncpa [#allocation9], 0
    %22 = vsyncpa [#allocation12], 0
    %23 = vsyncpa [#allocation4], 0
    %24 = vsyncpa [#allocation15], 0
    %25 = vsyncpa [#allocation18], 0
    // Predicated region
    $region2: #{tpu_custom_call.1} parent=1 // pred_check
      _
    $region3: #{tpu_custom_call.1} parent=1 // pred_check_branch
      %27 = sbr.rel (0) target = $region5
    $region4: #{tpu_custom_call.1} parent=1 // pred_region
      %s29 = ssub.s32 512, 512
      %30 = vsyncadd [#allocation3], %s29
      %s31 = sshll.u32 [#allocation2], 4
      %s32 = int_to_ptr.vmem [resolvable:$true] %s31
      %37 = dma.hbm_to_vmem [thread:$0]  %s0, 512, %s32, [#allocation3], 128, 128, 8
    $region5: #{tpu_custom_call.1} parent=1 // pred_fallthru
      _
    // Predicated region
    $region6: #{tpu_custom_call.1} parent=1 // pred_check
      _
    $region7: #{tpu_custom_call.1} parent=1 // pred_check_branch
      %39 = sbr.rel (0) target = $region9
    $region8: #{tpu_custom_call.1} parent=1 // pred_region
      %s41 = ssub.s32 512, 512
      %42 = vsyncadd [#allocation6], %s41
      %s43 = sshll.u32 [#allocation5], 4
      %s44 = int_to_ptr.vmem [resolvable:$true] %s43
      %49 = dma.hbm_to_vmem [thread:$0]  %s1, 512, %s44, [#allocation6], 128, 128, 8
    $region9: #{tpu_custom_call.1} parent=1 // pred_fallthru
      _
    // Predicated region
    $region10: #{tpu_custom_call.1} parent=1 // pred_check
      _
    $region11: #{tpu_custom_call.1} parent=1 // pred_check_branch
      %51 = sbr.rel (0) target = $region13
    $region12: #{tpu_custom_call.1} parent=1 // pred_region
      %s53 = ssub.s32 512, 512
      %54 = vsyncadd [#allocation6], %s53
      %s55 = sshll.u32 [#allocation7], 4
      %s56 = int_to_ptr.vmem [resolvable:$true] %s55
      %61 = dma.hbm_to_vmem [thread:$0]  %s2, 512, %s56, [#allocation6], 128, 128, 8
    $region13: #{tpu_custom_call.1} parent=1 // pred_fallthru
      _
    // Predicated region
    $region14: #{tpu_custom_call.1} parent=1 // pred_check
      _
    $region15: #{tpu_custom_call.1} parent=1 // pred_check_branch
      %63 = sbr.rel (0) target = $region17
    $region16: #{tpu_custom_call.1} parent=1 // pred_region
      %s65 = ssub.s32 512, 512
      %66 = vsyncadd [#allocation9], %s65
      %s67 = sshll.u32 [#allocation8], 4
      %s68 = int_to_ptr.vmem [resolvable:$true] %s67
      %73 = dma.hbm_to_vmem [thread:$0]  %s3, 512, %s68, [#allocation9], 128, 128, 8
    $region17: #{tpu_custom_call.1} parent=1 // pred_fallthru
      _
    // Predicated region
    $region18: #{tpu_custom_call.1} parent=1 // pred_check
      _
    $region19: #{tpu_custom_call.1} parent=1 // pred_check_branch
      %75 = sbr.rel (0) target = $region21
    $region20: #{tpu_custom_call.1} parent=1 // pred_region
      _
    $region21: #{tpu_custom_call.1} parent=1 // pred_fallthru
      _
    // Predicated region
    $region22: #{tpu_custom_call.1} parent=1 // pred_check
      _
    $region23: #{tpu_custom_call.1} parent=1 // pred_check_branch
      %77 = sbr.rel (0) target = $region25
    $region24: #{tpu_custom_call.1} parent=1 // pred_region
      _
    $region25: #{tpu_custom_call.1} parent=1 // pred_fallthru
      _
    // Predicated region
    $region26: #{tpu_custom_call.1} parent=1 // pred_check
      _
    $region27: #{tpu_custom_call.1} parent=1 // pred_check_branch
      %79 = sbr.rel (0) target = $region29
    $region28: #{tpu_custom_call.1} parent=1 // pred_region
      %s81 = ssub.s32 64, 64
      %82 = vsyncadd [#allocation9], %s81
      %s84 = sshll.u32 [#allocation10], 4
      %s85 = int_to_ptr.vmem [resolvable:$true] %s84
      %87 = dma.hbm_to_vmem [thread:$0]  %s6, 64, %s85, [#allocation9]
    $region29: #{tpu_custom_call.1} parent=1 // pred_fallthru
      _
    // Predicated region
    $region30: #{tpu_custom_call.1} parent=1 // pred_check
      _
    $region31: #{tpu_custom_call.1} parent=1 // pred_check_branch
      %89 = sbr.rel (0) target = $region33
    $region32: #{tpu_custom_call.1} parent=1 // pred_region
      _
    $region33: #{tpu_custom_call.1} parent=1 // pred_fallthru
      _
    // Predicated region
    $region34: #{tpu_custom_call.1} parent=1 // pred_check
      _
    $region35: #{tpu_custom_call.1} parent=1 // pred_check_branch
      %91 = sbr.rel (0) target = $region37
    $region36: #{tpu_custom_call.1} parent=1 // pred_region
      %s93 = ssub.s32 512, 512
      %94 = vsyncadd [#allocation12], %s93
      %s95 = sshll.u32 [#allocation11], 4
      %s96 = int_to_ptr.vmem [resolvable:$true] %s95
      %101 = dma.hbm_to_vmem [thread:$0]  %s8, 512, %s96, [#allocation12], 128, 128, 8
    $region37: #{tpu_custom_call.1} parent=1 // pred_fallthru
      _
    // Predicated region
    $region38: #{tpu_custom_call.1} parent=1 // pred_check
      _
    $region39: #{tpu_custom_call.1} parent=1 // pred_check_branch
      %103 = sbr.rel (0) target = $region41
    $region40: #{tpu_custom_call.1} parent=1 // pred_region
      _
    $region41: #{tpu_custom_call.1} parent=1 // pred_fallthru
      _
    // Predicated region
    $region42: #{tpu_custom_call.1} parent=1 // pred_check
      _
    $region43: #{tpu_custom_call.1} parent=1 // pred_check_branch
      %105 = sbr.rel (0) target = $region45
    $region44: #{tpu_custom_call.1} parent=1 // pred_region
      %106 = dma.done [#allocation3], 512
    $region45: #{tpu_custom_call.1} parent=1 // pred_fallthru
      _
    // Predicated region
    $region46: #{tpu_custom_call.1} parent=1 // pred_check
      _
    $region47: #{tpu_custom_call.1} parent=1 // pred_check_branch
      %108 = sbr.rel (0) target = $region49
    $region48: #{tpu_custom_call.1} parent=1 // pred_region
      %109 = dma.done [#allocation6], 512
    $region49: #{tpu_custom_call.1} parent=1 // pred_fallthru
      _
    // Predicated region
    $region50: #{tpu_custom_call.1} parent=1 // pred_check
      _
    $region51: #{tpu_custom_call.1} parent=1 // pred_check_branch
      %111 = sbr.rel (0) target = $region53
    $region52: #{tpu_custom_call.1} parent=1 // pred_region
      %112 = dma.done [#allocation6], 512
    $region53: #{tpu_custom_call.1} parent=1 // pred_fallthru
      _
    // Predicated region
    $region54: #{tpu_custom_call.1} parent=1 // pred_check
      _
    $region55: #{tpu_custom_call.1} parent=1 // pred_check_branch
      %114 = sbr.rel (0) target = $region57
    $region56: #{tpu_custom_call.1} parent=1 // pred_region
      %115 = dma.done [#allocation9], 512
    $region57: #{tpu_custom_call.1} parent=1 // pred_fallthru
      _
    // Predicated region
    $region58: #{tpu_custom_call.1} parent=1 // pred_check
      _
    $region59: #{tpu_custom_call.1} parent=1 // pred_check_branch
      %117 = sbr.rel (0) target = $region61
    $region60: #{tpu_custom_call.1} parent=1 // pred_region
      %118 = dma.done [#allocation9], 64
    $region61: #{tpu_custom_call.1} parent=1 // pred_fallthru
      _
    // Predicated region
    $region62: #{tpu_custom_call.1} parent=1 // pred_check
      _
    $region63: #{tpu_custom_call.1} parent=1 // pred_check_branch
      %120 = sbr.rel (0) target = $region65
    $region64: #{tpu_custom_call.1} parent=1 // pred_region
      %121 = dma.done [#allocation12], 512
    $region65: #{tpu_custom_call.1} parent=1 // pred_fallthru
      _
    %v122 = vld [vmem:[#allocation11] sm:$0xff]
    %v123 = vld [vmem:[#allocation11 + $0x8] sm:$0xff]
    %v124 = vld [vmem:[#allocation11 + $0x10] sm:$0xff]
    %v125 = vld [vmem:[#allocation11 + $0x18] sm:$0xff]
    %v126 = vld [vmem:[%s9] sm:$0x1]
    %v127 = vld [vmem:[%s4] sm:$0xf]
    %v128 = vld [vmem:[#allocation2] sm:$0xff]
    %v129 = vld [vmem:[#allocation2 + $0x8] sm:$0xff]
    %v130 = vld [vmem:[#allocation2 + $0x10] sm:$0xff]
    %v131 = vld [vmem:[#allocation2 + $0x18] sm:$0xff]
    %v133 = vlaneseq
    %v134 = vshrl.u32 %v133, 7
    %v135 = vsub.s32 0, %v134
    %v136 = vrot.slane %v126, %v135
    %vm138 = vcmask 261120
    %v140 = vsel %vm138, %v128, 0
    %v143 = vsel %vm138, %v129, 0
    %v146 = vsel %vm138, %v130, 0
    %v149 = vsel %vm138, %v131, 0
    %151 = vmatprep.subr.mxu0 0.0
    %152 = vmatpush1.msra.mxu0 0.0
    %153 = vmatprep.subr.mxu0 0.0
    %154 = vmatpush1.msra.mxu0 0.0
    %155 = vmatprep.subr.mxu0 0.0
    %156 = vmatpush1.msra.mxu0 0.0
    %157 = vmatprep.subr.mxu0 0.0
    %158 = vmatpush1.msra.mxu0 0.0
    %159 = vmatprep.subr.mxu0 0.0
    %160 = vmatpush1.msra.mxu0 0.0
    %161 = vmatprep.subr.mxu0 0.0
    %162 = vmatpush1.msra.mxu0 0.0
    %163 = vmatprep.subr.mxu0 0.0
    %164 = vmatpush1.msra.mxu0 0.0
    %165 = vmatprep.subr.mxu0 0.0
    %166 = vmatpush1.msra.mxu0 0.0
    %167 = vmatprep.subr.mxu0 0.0
    %168 = vmatpush1.msra.mxu0 0.0
    %169 = vmatprep.subr.mxu0 0.0
    %170 = vmatpush1.msra.mxu0 0.0
    %171 = vmatprep.subr.mxu0 0.0
    %172 = vmatpush1.msra.mxu0 0.0
    %173 = vmatprep.subr.mxu0 0.0
    %174 = vmatpush1.msra.mxu0 0.0
    %175 = vmatprep.subr.mxu0 0.0
    %176 = vmatpush1.msra.mxu0 %v125
    %177 = vmatprep.subr.mxu0 0.0
    %178 = vmatpush1.msra.mxu0 %v124
    %179 = vmatprep.subr.mxu0 0.0
    %180 = vmatpush1.msra.mxu0 %v123
    %181 = vmatprep.subr.mxu0 0.0
    %182 = vmatpush1.msra.mxu0 %v122
    %183 = vmatprep.subr.mxu0 0.0
    %184 = vmatpush2.msra.mxu0 0.0
    %185 = vmatprep.subr.mxu0 0.0
    %186 = vmatpush2.msra.mxu0 0.0
    %187 = vmatprep.subr.mxu0 0.0
    %188 = vmatpush2.msra.mxu0 0.0
    %189 = vmatprep.subr.mxu0 0.0
    %190 = vmatpush2.msra.mxu0 0.0
    %191 = vmatprep.subr.mxu0 0.0
    %192 = vmatpush2.msra.mxu0 0.0
    %193 = vmatprep.subr.mxu0 0.0
    %194 = vmatpush2.msra.mxu0 0.0
    %195 = vmatprep.subr.mxu0 0.0
    %196 = vmatpush2.msra.mxu0 0.0
    %197 = vmatprep.subr.mxu0 0.0
    %198 = vmatpush2.msra.mxu0 0.0
    %199 = vmatprep.subr.mxu0 0.0
    %200 = vmatpush2.msra.mxu0 0.0
    %201 = vmatprep.subr.mxu0 0.0
    %202 = vmatpush2.msra.mxu0 0.0
    %203 = vmatprep.subr.mxu0 0.0
    %204 = vmatpush2.msra.mxu0 0.0
    %205 = vmatprep.subr.mxu0 0.0
    %206 = vmatpush2.msra.mxu0 0.0
    %207 = vmatprep.subr.mxu0 0.0
    %208 = vmatpush2.msra.mxu0 0.0
    %209 = vmatprep.subr.mxu0 0.0
    %210 = vmatpush2.msra.mxu0 0.0
    %211 = vmatprep.subr.mxu0 0.0
    %212 = vmatpush2.msra.mxu0 0.0
    %213 = vmatprep.subr.mxu0 0.0
    %214 = vmatpush2.msra.mxu0 0.0
    %215 = vmatprep.mubr.f32.mxu0 0.0
    %216 = vmatmul.mubr.f32.gmra.mxu0 %v140
    %v217 = vpop.f32.mrf.mxu0
    %v218 = vadd.f32 %v136, %v217
    %v219 = vpop.f32.mrf.mxu0
    %220 = vmatprep.mubr.f32.mxu0 0.0
    %221 = vmatmul.mubr.f32.gmra.mxu0 %v143
    %v222 = vpop.f32.mrf.mxu0
    %v223 = vadd.f32 %v136, %v222
    %v224 = vpop.f32.mrf.mxu0
    %225 = vmatprep.mubr.f32.mxu0 0.0
    %226 = vmatmul.mubr.f32.gmra.mxu0 %v146
    %v227 = vpop.f32.mrf.mxu0
    %v228 = vadd.f32 %v136, %v227
    %v229 = vpop.f32.mrf.mxu0
    %230 = vmatprep.mubr.f32.mxu0 0.0
    %231 = vmatmul.mubr.f32.gmra.mxu0 %v149
    %v232 = vpop.f32.mrf.mxu0
    %v233 = vadd.f32 %v136, %v232
    %v234 = vpop.f32.mrf.mxu0
    %235 = vdwg.mxu0
    %v236 = vmul.f32 %v218, %v218
    %v237 = vmul.f32 %v223, %v223
    %v238 = vmul.f32 %v228, %v228
    %v239 = vmul.f32 %v233, %v233
    %v240 = vmul.f32 %v218, %v236
    %v241 = vmul.f32 %v223, %v237
    %v242 = vmul.f32 %v228, %v238
    %v243 = vmul.f32 %v233, %v239
    %v244 = vmul.f32 %v240, 0.044715
    %v245 = vmul.f32 %v241, 0.044715
    %v246 = vmul.f32 %v242, 0.044715
    %v247 = vmul.f32 %v243, 0.044715
    %v248 = vadd.f32 %v218, %v244
    %v249 = vadd.f32 %v223, %v245
    %v250 = vadd.f32 %v228, %v246
    %v251 = vadd.f32 %v233, %v247
    %v252 = vmul.f32 %v248, 0.7978846
    %v253 = vmul.f32 %v249, 0.7978846
    %v254 = vmul.f32 %v250, 0.7978846
    %v255 = vmul.f32 %v251, 0.7978846
    %v256 = vtanh.pop %v252
    %v257 = vtanh.pop %v253
    %v258 = vtanh.pop %v254
    %v259 = vtanh.pop %v255
    %v260 = vadd.f32 %v256, 1.0
    %v261 = vadd.f32 %v257, 1.0
    %v262 = vadd.f32 %v258, 1.0
    %v263 = vadd.f32 %v259, 1.0
    %v264 = vmul.f32 %v260, 0.5
    %v265 = vmul.f32 %v261, 0.5
    %v266 = vmul.f32 %v262, 0.5
    %v267 = vmul.f32 %v263, 0.5
    %v268 = vmul.f32 %v218, %v264
    %v269 = vmul.f32 %v223, %v265
    %v270 = vmul.f32 %v228, %v266
    %v271 = vmul.f32 %v233, %v267
    %v272 = vlaneseq
    %v273 = vshrl.u32 %v272, 7
    %v274 = vsub.s32 0, %v273
    %v275 = vrot.slane %v127, %v274
    %277 = vbcast.lane.b32.xlu0 %v275, 256
    %v278 = vpop.permute.xlu0 %277
    %v279 = vlaneseq
    %v280 = vshrl.u32 %v279, 7
    %v281 = vsub.s32 1, %v280
    %v282 = vrot.slane %v127, %v281
    %284 = vbcast.lane.b32.xlu0 %v282, 256
    %v285 = vpop.permute.xlu0 %284
    %v286 = vlaneseq
    %v287 = vshrl.u32 %v286, 7
    %v288 = vsub.s32 2, %v287
    %v289 = vrot.slane %v127, %v288
    %291 = vbcast.lane.b32.xlu0 %v289, 256
    %v292 = vpop.permute.xlu0 %291
    %v293 = vlaneseq
    %v294 = vshrl.u32 %v293, 7
    %v295 = vsub.s32 3, %v294
    %v296 = vrot.slane %v127, %v295
    %298 = vbcast.lane.b32.xlu0 %v296, 256
    %v299 = vpop.permute.xlu0 %298
    %v300 = vmul.f32 %v268, %v278
    %v301 = vmul.f32 %v269, %v285
    %v302 = vmul.f32 %v270, %v292
    %v303 = vmul.f32 %v271, %v299
    %v304 = vsel %vm138, %v300, 0.0
    %v305 = vrot.slane %v304, 4
    %v306 = vadd.f32 %v304, %v305
    %v307 = vrot.slane %v306, 2
    %v308 = vadd.f32 %v306, %v307
    %v309 = vrot.slane %v308, 1
    %v310 = vadd.f32 %v308, %v309
    %v311 = vsel %vm138, %v301, 0.0
    %v312 = vrot.slane %v311, 4
    %v313 = vadd.f32 %v311, %v312
    %v314 = vrot.slane %v313, 2
    %v315 = vadd.f32 %v313, %v314
    %v316 = vrot.slane %v315, 1
    %v317 = vadd.f32 %v315, %v316
    %v318 = vsel %vm138, %v302, 0.0
    %v319 = vrot.slane %v318, 4
    %v320 = vadd.f32 %v318, %v319
    %v321 = vrot.slane %v320, 2
    %v322 = vadd.f32 %v320, %v321
    %v323 = vrot.slane %v322, 1
    %v324 = vadd.f32 %v322, %v323
    %v325 = vsel %vm138, %v303, 0.0
    %v326 = vrot.slane %v325, 4
    %v327 = vadd.f32 %v325, %v326
    %v328 = vrot.slane %v327, 2
    %v329 = vadd.f32 %v327, %v328
    %v330 = vrot.slane %v329, 1
    %v331 = vadd.f32 %v329, %v330
    %v332 = vmul.f32 %v310, %v310
    %v333 = vmul.f32 %v317, %v317
    %v334 = vmul.f32 %v324, %v324
    %v335 = vmul.f32 %v331, %v331
    %vm340 = vcmask 1041409
    %v341 = vsel %vm340, %v333, %v332
    %vm342 = vcmask 1042434
    %v343 = vsel %vm342, %v334, %v341
    %vm344 = vcmask 1043459
    %v345 = vsel %vm344, %v335, %v343
    %vm347 = vcmask 257024
    %v348 = vsel %vm347, %v345, 0.0
    %349 = vadd.xlane.f32.xlu0 %v348
    %v350 = vpop.xlane.xlu0 %349
    %v351 = vmax.f32 %v350, 1e-24
    %v352 = vrsqrt.pop %v351
    %v354 = vrot.slane %v352, 1
    %v355 = vrot.slane %v352, 2
    %v356 = vrot.slane %v352, 3
    %v361 = vmul.f32 %v310, %v352
    %v362 = vmul.f32 %v317, %v354
    %v363 = vmul.f32 %v324, %v355
    %v364 = vmul.f32 %v331, %v356
    %v369 = vrot.slane %v362, 7
    %v370 = vsel %vm340, %v369, %v361
    %v371 = vrot.slane %v363, 6
    %v372 = vsel %vm342, %v371, %v370
    %v373 = vrot.slane %v364, 5
    %v374 = vsel %vm344, %v373, %v372
    %376 = vst.msk [vmem:[#allocation13] sm:$0xf] %vm347, %v374
    %v377 = vld [vmem:[%s5] sm:$0xf]
    %v378 = vld [vmem:[#allocation5] sm:$0xff]
    %v379 = vld [vmem:[#allocation5 + $0x8] sm:$0xff]
    %v380 = vld [vmem:[#allocation5 + $0x10] sm:$0xff]
    %v381 = vld [vmem:[#allocation5 + $0x18] sm:$0xff]
    %v383 = vsel %vm138, %v378, 0
    %v386 = vsel %vm138, %v379, 0
    %v389 = vsel %vm138, %v380, 0
    %v392 = vsel %vm138, %v381, 0
    %394 = vmatprep.subr.mxu0 0.0
    %395 = vmatpush1.msra.mxu0 0.0
    %396 = vmatprep.subr.mxu0 0.0
    %397 = vmatpush1.msra.mxu0 0.0
    %398 = vmatprep.subr.mxu0 0.0
    %399 = vmatpush1.msra.mxu0 0.0
    %400 = vmatprep.subr.mxu0 0.0
    %401 = vmatpush1.msra.mxu0 0.0
    %402 = vmatprep.subr.mxu0 0.0
    %403 = vmatpush1.msra.mxu0 0.0
    %404 = vmatprep.subr.mxu0 0.0
    %405 = vmatpush1.msra.mxu0 0.0
    %406 = vmatprep.subr.mxu0 0.0
    %407 = vmatpush1.msra.mxu0 0.0
    %408 = vmatprep.subr.mxu0 0.0
    %409 = vmatpush1.msra.mxu0 0.0
    %410 = vmatprep.subr.mxu0 0.0
    %411 = vmatpush1.msra.mxu0 0.0
    %412 = vmatprep.subr.mxu0 0.0
    %413 = vmatpush1.msra.mxu0 0.0
    %414 = vmatprep.subr.mxu0 0.0
    %415 = vmatpush1.msra.mxu0 0.0
    %416 = vmatprep.subr.mxu0 0.0
    %417 = vmatpush1.msra.mxu0 0.0
    %418 = vmatprep.subr.mxu0 0.0
    %419 = vmatpush1.msra.mxu0 %v125
    %420 = vmatprep.subr.mxu0 0.0
    %421 = vmatpush1.msra.mxu0 %v124
    %422 = vmatprep.subr.mxu0 0.0
    %423 = vmatpush1.msra.mxu0 %v123
    %424 = vmatprep.subr.mxu0 0.0
    %425 = vmatpush1.msra.mxu0 %v122
    %426 = vmatprep.subr.mxu0 0.0
    %427 = vmatpush2.msra.mxu0 0.0
    %428 = vmatprep.subr.mxu0 0.0
    %429 = vmatpush2.msra.mxu0 0.0
    %430 = vmatprep.subr.mxu0 0.0
    %431 = vmatpush2.msra.mxu0 0.0
    %432 = vmatprep.subr.mxu0 0.0
    %433 = vmatpush2.msra.mxu0 0.0
    %434 = vmatprep.subr.mxu0 0.0
    %435 = vmatpush2.msra.mxu0 0.0
    %436 = vmatprep.subr.mxu0 0.0
    %437 = vmatpush2.msra.mxu0 0.0
    %438 = vmatprep.subr.mxu0 0.0
    %439 = vmatpush2.msra.mxu0 0.0
    %440 = vmatprep.subr.mxu0 0.0
    %441 = vmatpush2.msra.mxu0 0.0
    %442 = vmatprep.subr.mxu0 0.0
    %443 = vmatpush2.msra.mxu0 0.0
    %444 = vmatprep.subr.mxu0 0.0
    %445 = vmatpush2.msra.mxu0 0.0
    %446 = vmatprep.subr.mxu0 0.0
    %447 = vmatpush2.msra.mxu0 0.0
    %448 = vmatprep.subr.mxu0 0.0
    %449 = vmatpush2.msra.mxu0 0.0
    %450 = vmatprep.subr.mxu0 0.0
    %451 = vmatpush2.msra.mxu0 0.0
    %452 = vmatprep.subr.mxu0 0.0
    %453 = vmatpush2.msra.mxu0 0.0
    %454 = vmatprep.subr.mxu0 0.0
    %455 = vmatpush2.msra.mxu0 0.0
    %456 = vmatprep.subr.mxu0 0.0
    %457 = vmatpush2.msra.mxu0 0.0
    %458 = vmatprep.mubr.f32.mxu0 0.0
    %459 = vmatmul.mubr.f32.gmra.mxu0 %v383
    %v460 = vpop.f32.mrf.mxu0
    %v461 = vadd.f32 %v136, %v460
    %v462 = vpop.f32.mrf.mxu0
    %463 = vmatprep.mubr.f32.mxu0 0.0
    %464 = vmatmul.mubr.f32.gmra.mxu0 %v386
    %v465 = vpop.f32.mrf.mxu0
    %v466 = vadd.f32 %v136, %v465
    %v467 = vpop.f32.mrf.mxu0
    %468 = vmatprep.mubr.f32.mxu0 0.0
    %469 = vmatmul.mubr.f32.gmra.mxu0 %v389
    %v470 = vpop.f32.mrf.mxu0
    %v471 = vadd.f32 %v136, %v470
    %v472 = vpop.f32.mrf.mxu0
    %473 = vmatprep.mubr.f32.mxu0 0.0
    %474 = vmatmul.mubr.f32.gmra.mxu0 %v392
    %v475 = vpop.f32.mrf.mxu0
    %v476 = vadd.f32 %v136, %v475
    %v477 = vpop.f32.mrf.mxu0
    %478 = vdwg.mxu0
    %v479 = vmul.f32 %v461, %v461
    %v480 = vmul.f32 %v466, %v466
    %v481 = vmul.f32 %v471, %v471
    %v482 = vmul.f32 %v476, %v476
    %v483 = vmul.f32 %v461, %v479
    %v484 = vmul.f32 %v466, %v480
    %v485 = vmul.f32 %v471, %v481
    %v486 = vmul.f32 %v476, %v482
    %v487 = vmul.f32 %v483, 0.044715
    %v488 = vmul.f32 %v484, 0.044715
    %v489 = vmul.f32 %v485, 0.044715
    %v490 = vmul.f32 %v486, 0.044715
    %v491 = vadd.f32 %v461, %v487
    %v492 = vadd.f32 %v466, %v488
    %v493 = vadd.f32 %v471, %v489
    %v494 = vadd.f32 %v476, %v490
    %v495 = vmul.f32 %v491, 0.7978846
    %v496 = vmul.f32 %v492, 0.7978846
    %v497 = vmul.f32 %v493, 0.7978846
    %v498 = vmul.f32 %v494, 0.7978846
    %v499 = vtanh.pop %v495
    %v500 = vtanh.pop %v496
    %v501 = vtanh.pop %v497
    %v502 = vtanh.pop %v498
    %v503 = vadd.f32 %v499, 1.0
    %v504 = vadd.f32 %v500, 1.0
    %v505 = vadd.f32 %v501, 1.0
    %v506 = vadd.f32 %v502, 1.0
    %v507 = vmul.f32 %v503, 0.5
    %v508 = vmul.f32 %v504, 0.5
    %v509 = vmul.f32 %v505, 0.5
    %v510 = vmul.f32 %v506, 0.5
    %v511 = vmul.f32 %v461, %v507
    %v512 = vmul.f32 %v466, %v508
    %v513 = vmul.f32 %v471, %v509
    %v514 = vmul.f32 %v476, %v510
    %v515 = vlaneseq
    %v516 = vshrl.u32 %v515, 7
    %v517 = vsub.s32 0, %v516
    %v518 = vrot.slane %v377, %v517
    %520 = vbcast.lane.b32.xlu0 %v518, 256
    %v521 = vpop.permute.xlu0 %520
    %v522 = vlaneseq
    %v523 = vshrl.u32 %v522, 7
    %v524 = vsub.s32 1, %v523
    %v525 = vrot.slane %v377, %v524
    %527 = vbcast.lane.b32.xlu0 %v525, 256
    %v528 = vpop.permute.xlu0 %527
    %v529 = vlaneseq
    %v530 = vshrl.u32 %v529, 7
    %v531 = vsub.s32 2, %v530
    %v532 = vrot.slane %v377, %v531
    %534 = vbcast.lane.b32.xlu0 %v532, 256
    %v535 = vpop.permute.xlu0 %534
    %v536 = vlaneseq
    %v537 = vshrl.u32 %v536, 7
    %v538 = vsub.s32 3, %v537
    %v539 = vrot.slane %v377, %v538
    %541 = vbcast.lane.b32.xlu0 %v539, 256
    %v542 = vpop.permute.xlu0 %541
    %v543 = vmul.f32 %v511, %v521
    %v544 = vmul.f32 %v512, %v528
    %v545 = vmul.f32 %v513, %v535
    %v546 = vmul.f32 %v514, %v542
    %v547 = vsel %vm138, %v543, 0.0
    %v548 = vrot.slane %v547, 4
    %v549 = vadd.f32 %v547, %v548
    %v550 = vrot.slane %v549, 2
    %v551 = vadd.f32 %v549, %v550
    %v552 = vrot.slane %v551, 1
    %v553 = vadd.f32 %v551, %v552
    %v554 = vsel %vm138, %v544, 0.0
    %v555 = vrot.slane %v554, 4
    %v556 = vadd.f32 %v554, %v555
    %v557 = vrot.slane %v556, 2
    %v558 = vadd.f32 %v556, %v557
    %v559 = vrot.slane %v558, 1
    %v560 = vadd.f32 %v558, %v559
    %v561 = vsel %vm138, %v545, 0.0
    %v562 = vrot.slane %v561, 4
    %v563 = vadd.f32 %v561, %v562
    %v564 = vrot.slane %v563, 2
    %v565 = vadd.f32 %v563, %v564
    %v566 = vrot.slane %v565, 1
    %v567 = vadd.f32 %v565, %v566
    %v568 = vsel %vm138, %v546, 0.0
    %v569 = vrot.slane %v568, 4
    %v570 = vadd.f32 %v568, %v569
    %v571 = vrot.slane %v570, 2
    %v572 = vadd.f32 %v570, %v571
    %v573 = vrot.slane %v572, 1
    %v574 = vadd.f32 %v572, %v573
    %v575 = vmul.f32 %v553, %v553
    %v576 = vmul.f32 %v560, %v560
    %v577 = vmul.f32 %v567, %v567
    %v578 = vmul.f32 %v574, %v574
    %v583 = vsel %vm340, %v576, %v575
    %v584 = vsel %vm342, %v577, %v583
    %v585 = vsel %vm344, %v578, %v584
    %v587 = vsel %vm347, %v585, 0.0
    %588 = vadd.xlane.f32.xlu0 %v587
    %v589 = vpop.xlane.xlu0 %588
    %v590 = vmax.f32 %v589, 1e-24
    %v591 = vrsqrt.pop %v590
    %v593 = vrot.slane %v591, 1
    %v594 = vrot.slane %v591, 2
    %v595 = vrot.slane %v591, 3
    %v600 = vmul.f32 %v553, %v591
    %v601 = vmul.f32 %v560, %v593
    %v602 = vmul.f32 %v567, %v594
    %v603 = vmul.f32 %v574, %v595
    %v608 = vrot.slane %v601, 7
    %v609 = vsel %vm340, %v608, %v600
    %v610 = vrot.slane %v602, 6
    %v611 = vsel %vm342, %v610, %v609
    %v612 = vrot.slane %v603, 5
    %v613 = vsel %vm344, %v612, %v611
    %615 = vst.msk [vmem:[#allocation14] sm:$0xf] %vm347, %v613
    %v616 = vld [vmem:[#allocation10] sm:$0xf]
    %v617 = vld [vmem:[#allocation7] sm:$0xff]
    %v618 = vld [vmem:[#allocation7 + $0x8] sm:$0xff]
    %v619 = vld [vmem:[#allocation7 + $0x10] sm:$0xff]
    %v620 = vld [vmem:[#allocation7 + $0x18] sm:$0xff]
    %v622 = vsel %vm138, %v617, 0
    %v625 = vsel %vm138, %v618, 0
    %v628 = vsel %vm138, %v619, 0
    %v631 = vsel %vm138, %v620, 0
    %633 = vmatprep.subr.mxu0 0.0
    %634 = vmatpush1.msra.mxu0 0.0
    %635 = vmatprep.subr.mxu0 0.0
    %636 = vmatpush1.msra.mxu0 0.0
    %637 = vmatprep.subr.mxu0 0.0
    %638 = vmatpush1.msra.mxu0 0.0
    %639 = vmatprep.subr.mxu0 0.0
    %640 = vmatpush1.msra.mxu0 0.0
    %641 = vmatprep.subr.mxu0 0.0
    %642 = vmatpush1.msra.mxu0 0.0
    %643 = vmatprep.subr.mxu0 0.0
    %644 = vmatpush1.msra.mxu0 0.0
    %645 = vmatprep.subr.mxu0 0.0
    %646 = vmatpush1.msra.mxu0 0.0
    %647 = vmatprep.subr.mxu0 0.0
    %648 = vmatpush1.msra.mxu0 0.0
    %649 = vmatprep.subr.mxu0 0.0
    %650 = vmatpush1.msra.mxu0 0.0
    %651 = vmatprep.subr.mxu0 0.0
    %652 = vmatpush1.msra.mxu0 0.0
    %653 = vmatprep.subr.mxu0 0.0
    %654 = vmatpush1.msra.mxu0 0.0
    %655 = vmatprep.subr.mxu0 0.0
    %656 = vmatpush1.msra.mxu0 0.0
    %657 = vmatprep.subr.mxu0 0.0
    %658 = vmatpush1.msra.mxu0 %v125
    %659 = vmatprep.subr.mxu0 0.0
    %660 = vmatpush1.msra.mxu0 %v124
    %661 = vmatprep.subr.mxu0 0.0
    %662 = vmatpush1.msra.mxu0 %v123
    %663 = vmatprep.subr.mxu0 0.0
    %664 = vmatpush1.msra.mxu0 %v122
    %665 = vmatprep.subr.mxu0 0.0
    %666 = vmatpush2.msra.mxu0 0.0
    %667 = vmatprep.subr.mxu0 0.0
    %668 = vmatpush2.msra.mxu0 0.0
    %669 = vmatprep.subr.mxu0 0.0
    %670 = vmatpush2.msra.mxu0 0.0
    %671 = vmatprep.subr.mxu0 0.0
    %672 = vmatpush2.msra.mxu0 0.0
    %673 = vmatprep.subr.mxu0 0.0
    %674 = vmatpush2.msra.mxu0 0.0
    %675 = vmatprep.subr.mxu0 0.0
    %676 = vmatpush2.msra.mxu0 0.0
    %677 = vmatprep.subr.mxu0 0.0
    %678 = vmatpush2.msra.mxu0 0.0
    %679 = vmatprep.subr.mxu0 0.0
    %680 = vmatpush2.msra.mxu0 0.0
    %681 = vmatprep.subr.mxu0 0.0
    %682 = vmatpush2.msra.mxu0 0.0
    %683 = vmatprep.subr.mxu0 0.0
    %684 = vmatpush2.msra.mxu0 0.0
    %685 = vmatprep.subr.mxu0 0.0
    %686 = vmatpush2.msra.mxu0 0.0
    %687 = vmatprep.subr.mxu0 0.0
    %688 = vmatpush2.msra.mxu0 0.0
    %689 = vmatprep.subr.mxu0 0.0
    %690 = vmatpush2.msra.mxu0 0.0
    %691 = vmatprep.subr.mxu0 0.0
    %692 = vmatpush2.msra.mxu0 0.0
    %693 = vmatprep.subr.mxu0 0.0
    %694 = vmatpush2.msra.mxu0 0.0
    %695 = vmatprep.subr.mxu0 0.0
    %696 = vmatpush2.msra.mxu0 0.0
    %697 = vmatprep.mubr.f32.mxu0 0.0
    %698 = vmatmul.mubr.f32.gmra.mxu0 %v622
    %v699 = vpop.f32.mrf.mxu0
    %v700 = vadd.f32 %v136, %v699
    %v701 = vpop.f32.mrf.mxu0
    %702 = vmatprep.mubr.f32.mxu0 0.0
    %703 = vmatmul.mubr.f32.gmra.mxu0 %v625
    %v704 = vpop.f32.mrf.mxu0
    %v705 = vadd.f32 %v136, %v704
    %v706 = vpop.f32.mrf.mxu0
    %707 = vmatprep.mubr.f32.mxu0 0.0
    %708 = vmatmul.mubr.f32.gmra.mxu0 %v628
    %v709 = vpop.f32.mrf.mxu0
    %v710 = vadd.f32 %v136, %v709
    %v711 = vpop.f32.mrf.mxu0
    %712 = vmatprep.mubr.f32.mxu0 0.0
    %713 = vmatmul.mubr.f32.gmra.mxu0 %v631
    %v714 = vpop.f32.mrf.mxu0
    %v715 = vadd.f32 %v136, %v714
    %v716 = vpop.f32.mrf.mxu0
    %717 = vdwg.mxu0
    %v718 = vmul.f32 %v700, %v700
    %v719 = vmul.f32 %v705, %v705
    %v720 = vmul.f32 %v710, %v710
    %v721 = vmul.f32 %v715, %v715
    %v722 = vmul.f32 %v700, %v718
    %v723 = vmul.f32 %v705, %v719
    %v724 = vmul.f32 %v710, %v720
    %v725 = vmul.f32 %v715, %v721
    %v726 = vmul.f32 %v722, 0.044715
    %v727 = vmul.f32 %v723, 0.044715
    %v728 = vmul.f32 %v724, 0.044715
    %v729 = vmul.f32 %v725, 0.044715
    %v730 = vadd.f32 %v700, %v726
    %v731 = vadd.f32 %v705, %v727
    %v732 = vadd.f32 %v710, %v728
    %v733 = vadd.f32 %v715, %v729
    %v734 = vmul.f32 %v730, 0.7978846
    %v735 = vmul.f32 %v731, 0.7978846
    %v736 = vmul.f32 %v732, 0.7978846
    %v737 = vmul.f32 %v733, 0.7978846
    %v738 = vtanh.pop %v734
    %v739 = vtanh.pop %v735
    %v740 = vtanh.pop %v736
    %v741 = vtanh.pop %v737
    %v742 = vadd.f32 %v738, 1.0
    %v743 = vadd.f32 %v739, 1.0
    %v744 = vadd.f32 %v740, 1.0
    %v745 = vadd.f32 %v741, 1.0
    %v746 = vmul.f32 %v742, 0.5
    %v747 = vmul.f32 %v743, 0.5
    %v748 = vmul.f32 %v744, 0.5
    %v749 = vmul.f32 %v745, 0.5
    %v750 = vmul.f32 %v700, %v746
    %v751 = vmul.f32 %v705, %v747
    %v752 = vmul.f32 %v710, %v748
    %v753 = vmul.f32 %v715, %v749
    %v754 = vlaneseq
    %v755 = vshrl.u32 %v754, 7
    %v756 = vsub.s32 0, %v755
    %v757 = vrot.slane %v616, %v756
    %759 = vbcast.lane.b32.xlu0 %v757, 256
    %v760 = vpop.permute.xlu0 %759
    %v761 = vlaneseq
    %v762 = vshrl.u32 %v761, 7
    %v763 = vsub.s32 1, %v762
    %v764 = vrot.slane %v616, %v763
    %766 = vbcast.lane.b32.xlu0 %v764, 256
    %v767 = vpop.permute.xlu0 %766
    %v768 = vlaneseq
    %v769 = vshrl.u32 %v768, 7
    %v770 = vsub.s32 2, %v769
    %v771 = vrot.slane %v616, %v770
    %773 = vbcast.lane.b32.xlu0 %v771, 256
    %v774 = vpop.permute.xlu0 %773
    %v775 = vlaneseq
    %v776 = vshrl.u32 %v775, 7
    %v777 = vsub.s32 3, %v776
    %v778 = vrot.slane %v616, %v777
    %780 = vbcast.lane.b32.xlu0 %v778, 256
    %v781 = vpop.permute.xlu0 %780
    %v782 = vmul.f32 %v750, %v760
    %v783 = vmul.f32 %v751, %v767
    %v784 = vmul.f32 %v752, %v774
    %v785 = vmul.f32 %v753, %v781
    %v786 = vsel %vm138, %v782, 0.0
    %v787 = vrot.slane %v786, 4
    %v788 = vadd.f32 %v786, %v787
    %v789 = vrot.slane %v788, 2
    %v790 = vadd.f32 %v788, %v789
    %v791 = vrot.slane %v790, 1
    %v792 = vadd.f32 %v790, %v791
    %v793 = vsel %vm138, %v783, 0.0
    %v794 = vrot.slane %v793, 4
    %v795 = vadd.f32 %v793, %v794
    %v796 = vrot.slane %v795, 2
    %v797 = vadd.f32 %v795, %v796
    %v798 = vrot.slane %v797, 1
    %v799 = vadd.f32 %v797, %v798
    %v800 = vsel %vm138, %v784, 0.0
    %v801 = vrot.slane %v800, 4
    %v802 = vadd.f32 %v800, %v801
    %v803 = vrot.slane %v802, 2
    %v804 = vadd.f32 %v802, %v803
    %v805 = vrot.slane %v804, 1
    %v806 = vadd.f32 %v804, %v805
    %v807 = vsel %vm138, %v785, 0.0
    %v808 = vrot.slane %v807, 4
    %v809 = vadd.f32 %v807, %v808
    %v810 = vrot.slane %v809, 2
    %v811 = vadd.f32 %v809, %v810
    %v812 = vrot.slane %v811, 1
    %v813 = vadd.f32 %v811, %v812
    %v814 = vmul.f32 %v792, %v792
    %v815 = vmul.f32 %v799, %v799
    %v816 = vmul.f32 %v806, %v806
    %v817 = vmul.f32 %v813, %v813
    %v822 = vsel %vm340, %v815, %v814
    %v823 = vsel %vm342, %v816, %v822
    %v824 = vsel %vm344, %v817, %v823
    %v826 = vsel %vm347, %v824, 0.0
    %827 = vadd.xlane.f32.xlu0 %v826
    %v828 = vpop.xlane.xlu0 %827
    %v829 = vmax.f32 %v828, 1e-24
    %v830 = vrsqrt.pop %v829
    %v832 = vrot.slane %v830, 1
    %v833 = vrot.slane %v830, 2
    %v834 = vrot.slane %v830, 3
    %v839 = vmul.f32 %v792, %v830
    %v840 = vmul.f32 %v799, %v832
    %v841 = vmul.f32 %v806, %v833
    %v842 = vmul.f32 %v813, %v834
    %v847 = vrot.slane %v840, 7
    %v848 = vsel %vm340, %v847, %v839
    %v849 = vrot.slane %v841, 6
    %v850 = vsel %vm342, %v849, %v848
    %v851 = vrot.slane %v842, 5
    %v852 = vsel %vm344, %v851, %v850
    %854 = vst.msk [vmem:[#allocation16] sm:$0xf] %vm347, %v852
    %v855 = vld [vmem:[%s7] sm:$0xf]
    %v856 = vld [vmem:[#allocation8] sm:$0xff]
    %v857 = vld [vmem:[#allocation8 + $0x8] sm:$0xff]
    %v858 = vld [vmem:[#allocation8 + $0x10] sm:$0xff]
    %v859 = vld [vmem:[#allocation8 + $0x18] sm:$0xff]
    %v861 = vsel %vm138, %v856, 0
    %v864 = vsel %vm138, %v857, 0
    %v867 = vsel %vm138, %v858, 0
    %v870 = vsel %vm138, %v859, 0
    %872 = vmatprep.subr.mxu0 0.0
    %873 = vmatpush1.msra.mxu0 0.0
    %874 = vmatprep.subr.mxu0 0.0
    %875 = vmatpush1.msra.mxu0 0.0
    %876 = vmatprep.subr.mxu0 0.0
    %877 = vmatpush1.msra.mxu0 0.0
    %878 = vmatprep.subr.mxu0 0.0
    %879 = vmatpush1.msra.mxu0 0.0
    %880 = vmatprep.subr.mxu0 0.0
    %881 = vmatpush1.msra.mxu0 0.0
    %882 = vmatprep.subr.mxu0 0.0
    %883 = vmatpush1.msra.mxu0 0.0
    %884 = vmatprep.subr.mxu0 0.0
    %885 = vmatpush1.msra.mxu0 0.0
    %886 = vmatprep.subr.mxu0 0.0
    %887 = vmatpush1.msra.mxu0 0.0
    %888 = vmatprep.subr.mxu0 0.0
    %889 = vmatpush1.msra.mxu0 0.0
    %890 = vmatprep.subr.mxu0 0.0
    %891 = vmatpush1.msra.mxu0 0.0
    %892 = vmatprep.subr.mxu0 0.0
    %893 = vmatpush1.msra.mxu0 0.0
    %894 = vmatprep.subr.mxu0 0.0
    %895 = vmatpush1.msra.mxu0 0.0
    %896 = vmatprep.subr.mxu0 0.0
    %897 = vmatpush1.msra.mxu0 %v125
    %898 = vmatprep.subr.mxu0 0.0
    %899 = vmatpush1.msra.mxu0 %v124
    %900 = vmatprep.subr.mxu0 0.0
    %901 = vmatpush1.msra.mxu0 %v123
    %902 = vmatprep.subr.mxu0 0.0
    %903 = vmatpush1.msra.mxu0 %v122
    %904 = vmatprep.subr.mxu0 0.0
    %905 = vmatpush2.msra.mxu0 0.0
    %906 = vmatprep.subr.mxu0 0.0
    %907 = vmatpush2.msra.mxu0 0.0
    %908 = vmatprep.subr.mxu0 0.0
    %909 = vmatpush2.msra.mxu0 0.0
    %910 = vmatprep.subr.mxu0 0.0
    %911 = vmatpush2.msra.mxu0 0.0
    %912 = vmatprep.subr.mxu0 0.0
    %913 = vmatpush2.msra.mxu0 0.0
    %914 = vmatprep.subr.mxu0 0.0
    %915 = vmatpush2.msra.mxu0 0.0
    %916 = vmatprep.subr.mxu0 0.0
    %917 = vmatpush2.msra.mxu0 0.0
    %918 = vmatprep.subr.mxu0 0.0
    %919 = vmatpush2.msra.mxu0 0.0
    %920 = vmatprep.subr.mxu0 0.0
    %921 = vmatpush2.msra.mxu0 0.0
    %922 = vmatprep.subr.mxu0 0.0
    %923 = vmatpush2.msra.mxu0 0.0
    %924 = vmatprep.subr.mxu0 0.0
    %925 = vmatpush2.msra.mxu0 0.0
    %926 = vmatprep.subr.mxu0 0.0
    %927 = vmatpush2.msra.mxu0 0.0
    %928 = vmatprep.subr.mxu0 0.0
    %929 = vmatpush2.msra.mxu0 0.0
    %930 = vmatprep.subr.mxu0 0.0
    %931 = vmatpush2.msra.mxu0 0.0
    %932 = vmatprep.subr.mxu0 0.0
    %933 = vmatpush2.msra.mxu0 0.0
    %934 = vmatprep.subr.mxu0 0.0
    %935 = vmatpush2.msra.mxu0 0.0
    %936 = vmatprep.mubr.f32.mxu0 0.0
    %937 = vmatmul.mubr.f32.gmra.mxu0 %v861
    %v938 = vpop.f32.mrf.mxu0
    %v939 = vadd.f32 %v136, %v938
    %v940 = vpop.f32.mrf.mxu0
    %941 = vmatprep.mubr.f32.mxu0 0.0
    %942 = vmatmul.mubr.f32.gmra.mxu0 %v864
    %v943 = vpop.f32.mrf.mxu0
    %v944 = vadd.f32 %v136, %v943
    %v945 = vpop.f32.mrf.mxu0
    %946 = vmatprep.mubr.f32.mxu0 0.0
    %947 = vmatmul.mubr.f32.gmra.mxu0 %v867
    %v948 = vpop.f32.mrf.mxu0
    %v949 = vadd.f32 %v136, %v948
    %v950 = vpop.f32.mrf.mxu0
    %951 = vmatprep.mubr.f32.mxu0 0.0
    %952 = vmatmul.mubr.f32.gmra.mxu0 %v870
    %v953 = vpop.f32.mrf.mxu0
    %v954 = vadd.f32 %v136, %v953
    %v955 = vpop.f32.mrf.mxu0
    %956 = vdwg.mxu0
    %v957 = vmul.f32 %v939, %v939
    %v958 = vmul.f32 %v944, %v944
    %v959 = vmul.f32 %v949, %v949
    %v960 = vmul.f32 %v954, %v954
    %v961 = vmul.f32 %v939, %v957
    %v962 = vmul.f32 %v944, %v958
    %v963 = vmul.f32 %v949, %v959
    %v964 = vmul.f32 %v954, %v960
    %v965 = vmul.f32 %v961, 0.044715
    %v966 = vmul.f32 %v962, 0.044715
    %v967 = vmul.f32 %v963, 0.044715
    %v968 = vmul.f32 %v964, 0.044715
    %v969 = vadd.f32 %v939, %v965
    %v970 = vadd.f32 %v944, %v966
    %v971 = vadd.f32 %v949, %v967
    %v972 = vadd.f32 %v954, %v968
    %v973 = vmul.f32 %v969, 0.7978846
    %v974 = vmul.f32 %v970, 0.7978846
    %v975 = vmul.f32 %v971, 0.7978846
    %v976 = vmul.f32 %v972, 0.7978846
    %v977 = vtanh.pop %v973
    %v978 = vtanh.pop %v974
    %v979 = vtanh.pop %v975
    %v980 = vtanh.pop %v976
    %v981 = vadd.f32 %v977, 1.0
    %v982 = vadd.f32 %v978, 1.0
    %v983 = vadd.f32 %v979, 1.0
    %v984 = vadd.f32 %v980, 1.0
    %v985 = vmul.f32 %v981, 0.5
    %v986 = vmul.f32 %v982, 0.5
    %v987 = vmul.f32 %v983, 0.5
    %v988 = vmul.f32 %v984, 0.5
    %v989 = vmul.f32 %v939, %v985
    %v990 = vmul.f32 %v944, %v986
    %v991 = vmul.f32 %v949, %v987
    %v992 = vmul.f32 %v954, %v988
    %v993 = vlaneseq
    %v994 = vshrl.u32 %v993, 7
    %v995 = vsub.s32 0, %v994
    %v996 = vrot.slane %v855, %v995
    %998 = vbcast.lane.b32.xlu0 %v996, 256
    %v999 = vpop.permute.xlu0 %998
    %v1000 = vlaneseq
    %v1001 = vshrl.u32 %v1000, 7
    %v1002 = vsub.s32 1, %v1001
    %v1003 = vrot.slane %v855, %v1002
    %1005 = vbcast.lane.b32.xlu0 %v1003, 256
    %v1006 = vpop.permute.xlu0 %1005
    %v1007 = vlaneseq
    %v1008 = vshrl.u32 %v1007, 7
    %v1009 = vsub.s32 2, %v1008
    %v1010 = vrot.slane %v855, %v1009
    %1012 = vbcast.lane.b32.xlu0 %v1010, 256
    %v1013 = vpop.permute.xlu0 %1012
    %v1014 = vlaneseq
    %v1015 = vshrl.u32 %v1014, 7
    %v1016 = vsub.s32 3, %v1015
    %v1017 = vrot.slane %v855, %v1016
    %1019 = vbcast.lane.b32.xlu0 %v1017, 256
    %v1020 = vpop.permute.xlu0 %1019
    %v1021 = vmul.f32 %v989, %v999
    %v1022 = vmul.f32 %v990, %v1006
    %v1023 = vmul.f32 %v991, %v1013
    %v1024 = vmul.f32 %v992, %v1020
    %v1025 = vsel %vm138, %v1021, 0.0
    %v1026 = vrot.slane %v1025, 4
    %v1027 = vadd.f32 %v1025, %v1026
    %v1028 = vrot.slane %v1027, 2
    %v1029 = vadd.f32 %v1027, %v1028
    %v1030 = vrot.slane %v1029, 1
    %v1031 = vadd.f32 %v1029, %v1030
    %v1032 = vsel %vm138, %v1022, 0.0
    %v1033 = vrot.slane %v1032, 4
    %v1034 = vadd.f32 %v1032, %v1033
    %v1035 = vrot.slane %v1034, 2
    %v1036 = vadd.f32 %v1034, %v1035
    %v1037 = vrot.slane %v1036, 1
    %v1038 = vadd.f32 %v1036, %v1037
    %v1039 = vsel %vm138, %v1023, 0.0
    %v1040 = vrot.slane %v1039, 4
    %v1041 = vadd.f32 %v1039, %v1040
    %v1042 = vrot.slane %v1041, 2
    %v1043 = vadd.f32 %v1041, %v1042
    %v1044 = vrot.slane %v1043, 1
    %v1045 = vadd.f32 %v1043, %v1044
    %v1046 = vsel %vm138, %v1024, 0.0
    %v1047 = vrot.slane %v1046, 4
    %v1048 = vadd.f32 %v1046, %v1047
    %v1049 = vrot.slane %v1048, 2
    %v1050 = vadd.f32 %v1048, %v1049
    %v1051 = vrot.slane %v1050, 1
    %v1052 = vadd.f32 %v1050, %v1051
    %v1053 = vmul.f32 %v1031, %v1031
    %v1054 = vmul.f32 %v1038, %v1038
    %v1055 = vmul.f32 %v1045, %v1045
    %v1056 = vmul.f32 %v1052, %v1052
    %v1061 = vsel %vm340, %v1054, %v1053
    %v1062 = vsel %vm342, %v1055, %v1061
    %v1063 = vsel %vm344, %v1056, %v1062
    %v1065 = vsel %vm347, %v1063, 0.0
    %1066 = vadd.xlane.f32.xlu0 %v1065
    %v1067 = vpop.xlane.xlu0 %1066
    %v1068 = vmax.f32 %v1067, 1e-24
    %v1069 = vrsqrt.pop %v1068
    %v1071 = vrot.slane %v1069, 1
    %v1072 = vrot.slane %v1069, 2
    %v1073 = vrot.slane %v1069, 3
    %v1078 = vmul.f32 %v1031, %v1069
    %v1079 = vmul.f32 %v1038, %v1071
    %v1080 = vmul.f32 %v1045, %v1072
    %v1081 = vmul.f32 %v1052, %v1073
    %v1086 = vrot.slane %v1079, 7
    %v1087 = vsel %vm340, %v1086, %v1078
    %v1088 = vrot.slane %v1080, 6
    %v1089 = vsel %vm342, %v1088, %v1087
    %v1090 = vrot.slane %v1081, 5
    %v1091 = vsel %vm344, %v1090, %v1089
    %1093 = vst.msk [vmem:[#allocation17] sm:$0xf] %vm347, %v1091
    // Predicated region
    $region66: #{tpu_custom_call.1} parent=1 // pred_check
      _
    $region67: #{tpu_custom_call.1} parent=1 // pred_check_branch
      %1095 = sbr.rel (0) target = $region69
    $region68: #{tpu_custom_call.1} parent=1 // pred_region
      %s1097 = ssub.s32 64, 64
      %1098 = vsyncadd [#allocation4], %s1097
      %s1100 = sshll.u32 [#allocation13], 4
      %s1101 = int_to_ptr.vmem [resolvable:$true] %s1100
      %1103 = dma.vmem_to_hbm [thread:$0]  %s1101, 64, %s10, [#allocation4]
    $region69: #{tpu_custom_call.1} parent=1 // pred_fallthru
      _
    // Predicated region
    $region70: #{tpu_custom_call.1} parent=1 // pred_check
      _
    $region71: #{tpu_custom_call.1} parent=1 // pred_check_branch
      %1105 = sbr.rel (0) target = $region73
    $region72: #{tpu_custom_call.1} parent=1 // pred_region
      %s1107 = ssub.s32 64, 64
      %1108 = vsyncadd [#allocation15], %s1107
      %s1110 = sshll.u32 [#allocation14], 4
      %s1111 = int_to_ptr.vmem [resolvable:$true] %s1110
      %1113 = dma.vmem_to_hbm [thread:$0]  %s1111, 64, %s11, [#allocation15]
    $region73: #{tpu_custom_call.1} parent=1 // pred_fallthru
      _
    // Predicated region
    $region74: #{tpu_custom_call.1} parent=1 // pred_check
      _
    $region75: #{tpu_custom_call.1} parent=1 // pred_check_branch
      %1115 = sbr.rel (0) target = $region77
    $region76: #{tpu_custom_call.1} parent=1 // pred_region
      %s1117 = ssub.s32 64, 64
      %1118 = vsyncadd [#allocation15], %s1117
      %s1120 = sshll.u32 [#allocation16], 4
      %s1121 = int_to_ptr.vmem [resolvable:$true] %s1120
      %1123 = dma.vmem_to_hbm [thread:$0]  %s1121, 64, %s12, [#allocation15]
    $region77: #{tpu_custom_call.1} parent=1 // pred_fallthru
      _
    // Predicated region
    $region78: #{tpu_custom_call.1} parent=1 // pred_check
      _
    $region79: #{tpu_custom_call.1} parent=1 // pred_check_branch
      %1125 = sbr.rel (0) target = $region81
    $region80: #{tpu_custom_call.1} parent=1 // pred_region
      %s1127 = ssub.s32 64, 64
      %1128 = vsyncadd [#allocation18], %s1127
      %s1130 = sshll.u32 [#allocation17], 4
      %s1131 = int_to_ptr.vmem [resolvable:$true] %s1130
      %1133 = dma.vmem_to_hbm [thread:$0]  %s1131, 64, %s13, [#allocation18]
    $region81: #{tpu_custom_call.1} parent=1 // pred_fallthru
      _
    // Predicated region
    $region82: #{tpu_custom_call.1} parent=1 // pred_check
      _
    $region83: #{tpu_custom_call.1} parent=1 // pred_check_branch
      %1135 = sbr.rel (0) target = $region85
    $region84: #{tpu_custom_call.1} parent=1 // pred_region
      %1136 = dma.done [#allocation4], 64
    $region85: #{tpu_custom_call.1} parent=1 // pred_fallthru
      _
    // Predicated region
    $region86: #{tpu_custom_call.1} parent=1 // pred_check
      _
    $region87: #{tpu_custom_call.1} parent=1 // pred_check_branch
      %1138 = sbr.rel (0) target = $region89
    $region88: #{tpu_custom_call.1} parent=1 // pred_region
      %1139 = dma.done [#allocation15], 64
    $region89: #{tpu_custom_call.1} parent=1 // pred_fallthru
      _
    // Predicated region
    $region90: #{tpu_custom_call.1} parent=1 // pred_check
      _
    $region91: #{tpu_custom_call.1} parent=1 // pred_check_branch
      %1141 = sbr.rel (0) target = $region93
    $region92: #{tpu_custom_call.1} parent=1 // pred_region
      %1142 = dma.done [#allocation15], 64
    $region93: #{tpu_custom_call.1} parent=1 // pred_fallthru
      _
    // Predicated region
    $region94: #{tpu_custom_call.1} parent=1 // pred_check
      _
    $region95: #{tpu_custom_call.1} parent=1 // pred_check_branch
      %1144 = sbr.rel (0) target = $region97
    $region96: #{tpu_custom_call.1} parent=1 // pred_region
      %1145 = dma.done [#allocation18], 64
    $region97: #{tpu_custom_call.1} parent=1 // pred_fallthru
      _
    %1146 = vsyncpa [#allocation3], 1
    %1147 = vsyncpa [#allocation6], 1
    %1148 = vsyncpa [#allocation9], 1
    %1149 = vsyncpa [#allocation12], 1
    %1150 = vsyncpa [#allocation4], 1
    %1151 = vsyncpa [#allocation15], 1
    %1152 = vsyncpa [#allocation18], 1

</llo_original>
